<compile_context>
chip_gen: v5e
topology: v5e:2x2
jax: 0.10.0
libtpu: 0.0.40
codegen_flags: <defaults>
</compile_context>

<pallas_src>
import functools

import jax
import jax.numpy as jnp
from jax import lax
from jax.experimental import pallas as pl
from jax.experimental.pallas import tpu as pltpu


def mlp_kernel(x_ref, w1_ref, b1_ref, w2_ref, b2_ref, w3_ref, b3_ref, o_ref):
    x = x_ref[...]                                   # (TILE_B, 42), batch on sublanes
    # Layer 1: NT matmul (same dim-numbers as flash-attention q@k^T):
    # (16, 42) x (TILE_B, 42)^T -> (16, TILE_B); batch moves to the lane axis.
    h1 = lax.dot_general(w1_ref[...], x, (((1,), (1,)), ((), ())),
                         precision=lax.Precision.HIGHEST,
                         preferred_element_type=jnp.float32)
    h1 = jnp.maximum(h1 + b1_ref[...], 0.0)
    # TODO(synk): Dropout(p=0.1) is identity in eval mode; train-mode masking
    # (pltpu.prng_seed / prng_random_bits) not implemented.
    # Layer 2: (8, 16) x (16, TILE_B) -> (8, TILE_B), natural MXU orientation.
    h2 = lax.dot_general(w2_ref[...], h1, (((1,), (0,)), ((), ())),
                         precision=lax.Precision.HIGHEST,
                         preferred_element_type=jnp.float32)
    h2 = jnp.maximum(h2 + b2_ref[...], 0.0)
    # Layer 3 (8 -> 1): VPU multiply + sublane reduce -> lane-dense (1, TILE_B) store.
    o_ref[...] = jnp.sum(h2 * w3_ref[...], axis=0, keepdims=True) + b3_ref[...]


@functools.partial(jax.jit, static_argnames=("tile_b",))
def model3_forward(x, params, *, tile_b=8192):
    """x: (B, 6, 7) float32 -> logits (B, 1) float32 (eval mode)."""
    w1, b1, w2, b2, w3, b3 = params
    B = x.shape[0]
    x_flat = x.reshape(B, -1)                  # nn.Flatten -> (B, 42); free (contiguous)
    in_dim = x_flat.shape[1]

    assert tile_b % 128 == 0
    b128 = pl.cdiv(B, 128) * 128               # lane-dense tile granule
    tile = min(tile_b, b128)
    # Keep >= 2 grid steps when B allows so the "parallel" batch axis can shard
    # across both TensorCores on v7x (harmless on single-TC v5e/v6e).
    if tile >= b128 and b128 >= 256:
        tile = pl.cdiv(b128 // 2, 128) * 128
    num_tiles = pl.cdiv(B, tile)               # ragged last block handled by Pallas

    # VMEM sizing: a (tile, 42) f32 block is lane-padded to (tile, 128) -> tile*512 B
    # per buffer, tile KiB double-buffered; add headroom for activations / internal
    # scratch and cap at 48 MiB (v7x has 64 MiB physical per TC, v5e default scoped
    # is only 16 MiB so the explicit limit is what unlocks big tiles there).
    vmem_limit = min(48 << 20, max(32 << 20, tile * 1024 + (16 << 20)))

    const = lambda i: (0, 0)                   # resident weight/bias blocks
    out = pl.pallas_call(
        mlp_kernel,
        out_shape=jax.ShapeDtypeStruct((1, B), jnp.float32),
        grid=(num_tiles,),
        in_specs=[
            pl.BlockSpec((tile, in_dim), lambda i: (i, 0)),   # streamed x tiles
            pl.BlockSpec(w1.shape, const),
            pl.BlockSpec(b1.shape, const),
            pl.BlockSpec(w2.shape, const),
            pl.BlockSpec(b2.shape, const),
            pl.BlockSpec(w3.shape, const),
            pl.BlockSpec(b3.shape, const),
        ],
        out_specs=pl.BlockSpec((1, tile), lambda i: (0, i)),  # lane-dense output slab
        compiler_params=pltpu.CompilerParams(
            dimension_semantics=("parallel",),
            vmem_limit_bytes=vmem_limit),
    )(x_flat, w1, b1, w2, b2, w3, b3)
    return out.reshape(B, 1)


def init_params(key):
    """Deterministic init; weights stored PyTorch-style (out, in) except w3 as (in, 1)."""
    ks = jax.random.split(key, 6)

    def uinit(k, shape, fan_in):
        bound = 1.0 / jnp.sqrt(fan_in)
        return jax.random.uniform(k, shape, jnp.float32, -bound, bound)

    w1 = uinit(ks[0], (16, 42), 42.0)   # (out, in)
    b1 = uinit(ks[1], (16, 1), 42.0)
    w2 = uinit(ks[2], (8, 16), 16.0)    # (out, in)
    b2 = uinit(ks[3], (8, 1), 16.0)
    w3 = uinit(ks[4], (8, 1), 8.0)      # column (in, out) for the VPU reduce
    b3 = uinit(ks[5], (1, 1), 8.0)
    return (w1, b1, w2, b2, w3, b3)


if __name__ == "__main__":
    key = jax.random.PRNGKey(0)
    k_x, k_p = jax.random.split(key)
    B = 300                       # non-multiple of the tile -> exercises the ragged last block
    x = jax.random.normal(k_x, (B, 6, 7), dtype=jnp.float32)   # flattens to (B, 42)
    params = init_params(k_p)

    logits = model3_forward(x, params)      # default tile_b, clamped -> 2 grid tiles
    jax.block_until_ready(logits)

    # Plain-JAX reference (eval-mode dropout = identity).
    w1, b1, w2, b2, w3, b3 = params
    hp = jax.lax.Precision.HIGHEST
    xf = x.reshape(B, -1)
    h1 = jnp.maximum(jnp.dot(xf, w1.T, precision=hp) + b1.T, 0.0)
    h2 = jnp.maximum(jnp.dot(h1, w2.T, precision=hp) + b2.T, 0.0)
    ref = jnp.dot(h2, w3, precision=hp) + b3.T

    assert logits.shape == (B, 1)
    assert jnp.allclose(logits, ref, atol=1e-3, rtol=1e-3), float(
        jnp.max(jnp.abs(logits - ref)))

    print("KERNEL_OK")
</pallas_src>

<mosaic_0001>
module attributes {stable_mosaic.version = 11 : i64} {
  func.func @mlp_kernel(%arg0: i32, %arg1: memref<256x42xf32, #tpu.memory_space<vmem>>, %arg2: memref<16x42xf32, #tpu.memory_space<vmem>>, %arg3: memref<16x1xf32, #tpu.memory_space<vmem>>, %arg4: memref<8x16xf32, #tpu.memory_space<vmem>>, %arg5: memref<8x1xf32, #tpu.memory_space<vmem>>, %arg6: memref<8x1xf32, #tpu.memory_space<vmem>>, %arg7: memref<1x1xf32, #tpu.memory_space<vmem>>, %arg8: memref<1x256xf32, #tpu.memory_space<vmem>>) attributes {dimension_semantics = [#tpu.dimension_semantics<parallel>], iteration_bounds = array<i64: 2>, scalar_prefetch = 0 : i64, scratch_operands = 0 : i64, tpu.core_type = #tpu.core_type<tc>, window_params = [{transform_indices = @transform_0, window_bounds = array<i64: 256, 42>}, {pipeline_mode = #tpu.pipeline_mode<synchronous>, transform_indices = @transform_1, window_bounds = array<i64: 16, 42>}, {pipeline_mode = #tpu.pipeline_mode<synchronous>, transform_indices = @transform_2, window_bounds = array<i64: 16, 1>}, {pipeline_mode = #tpu.pipeline_mode<synchronous>, transform_indices = @transform_3, window_bounds = array<i64: 8, 16>}, {pipeline_mode = #tpu.pipeline_mode<synchronous>, transform_indices = @transform_4, window_bounds = array<i64: 8, 1>}, {pipeline_mode = #tpu.pipeline_mode<synchronous>, transform_indices = @transform_5, window_bounds = array<i64: 8, 1>}, {pipeline_mode = #tpu.pipeline_mode<synchronous>, transform_indices = @transform_6, window_bounds = array<i64: 1, 1>}, {transform_indices = @transform_7, window_bounds = array<i64: 1, 256>}]} {
    %c0 = arith.constant 0 : index
    %c0_0 = arith.constant 0 : index
    %0 = vector.load %arg1[%c0, %c0_0] : memref<256x42xf32, #tpu.memory_space<vmem>>, vector<256x42xf32>
    %c0_1 = arith.constant 0 : index
    %c0_2 = arith.constant 0 : index
    %1 = vector.load %arg2[%c0_1, %c0_2] : memref<16x42xf32, #tpu.memory_space<vmem>>, vector<16x42xf32>
    %cst = arith.constant dense<0.000000e+00> : vector<16x256xf32>
    %2 = tpu.matmul %1, %0, %cst {dimension_numbers = #tpu.dot_dimension_numbers<[1], [1], [0], [0], [0, 0, 1, 0], [], []>, precision = #tpu.contract_precision<fp32>} : vector<16x42xf32>, vector<256x42xf32>, vector<16x256xf32> -> vector<16x256xf32>
    %c0_3 = arith.constant 0 : index
    %c0_4 = arith.constant 0 : index
    %3 = vector.load %arg3[%c0_3, %c0_4] : memref<16x1xf32, #tpu.memory_space<vmem>>, vector<16x1xf32>
    %4 = vector.broadcast %3 : vector<16x1xf32> to vector<16x256xf32>
    %5 = arith.addf %2, %4 : vector<16x256xf32>
    %cst_5 = arith.constant 0.000000e+00 : f32
    %6 = vector.broadcast %cst_5 : f32 to vector<16x256xf32>
    %7 = arith.maximumf %5, %6 : vector<16x256xf32>
    %c0_6 = arith.constant 0 : index
    %c0_7 = arith.constant 0 : index
    %8 = vector.load %arg4[%c0_6, %c0_7] : memref<8x16xf32, #tpu.memory_space<vmem>>, vector<8x16xf32>
    %cst_8 = arith.constant dense<0.000000e+00> : vector<8x256xf32>
    %9 = tpu.matmul %8, %7, %cst_8 {dimension_numbers = #tpu.dot_dimension_numbers<[1], [0], [0], [1], [0, 0, 1, 1], [], []>, precision = #tpu.contract_precision<fp32>} : vector<8x16xf32>, vector<16x256xf32>, vector<8x256xf32> -> vector<8x256xf32>
    %c0_9 = arith.constant 0 : index
    %c0_10 = arith.constant 0 : index
    %10 = vector.load %arg5[%c0_9, %c0_10] : memref<8x1xf32, #tpu.memory_space<vmem>>, vector<8x1xf32>
    %11 = vector.broadcast %10 : vector<8x1xf32> to vector<8x256xf32>
    %12 = arith.addf %9, %11 : vector<8x256xf32>
    %cst_11 = arith.constant 0.000000e+00 : f32
    %13 = vector.broadcast %cst_11 : f32 to vector<8x256xf32>
    %14 = arith.maximumf %12, %13 : vector<8x256xf32>
    %c0_12 = arith.constant 0 : index
    %c0_13 = arith.constant 0 : index
    %15 = vector.load %arg6[%c0_12, %c0_13] : memref<8x1xf32, #tpu.memory_space<vmem>>, vector<8x1xf32>
    %16 = vector.broadcast %15 : vector<8x1xf32> to vector<8x256xf32>
    %17 = arith.mulf %14, %16 : vector<8x256xf32>
    %cst_14 = arith.constant dense<0.000000e+00> : vector<256xf32>
    %18 = vector.multi_reduction <add>, %17, %cst_14 [0] : vector<8x256xf32> to vector<256xf32>
    %19 = vector.shape_cast %18 : vector<256xf32> to vector<1x256xf32>
    %c0_15 = arith.constant 0 : index
    %c0_16 = arith.constant 0 : index
    %20 = vector.load %arg7[%c0_15, %c0_16] : memref<1x1xf32, #tpu.memory_space<vmem>>, vector<1x1xf32>
    %21 = vector.broadcast %20 : vector<1x1xf32> to vector<1x256xf32>
    %22 = arith.addf %19, %21 : vector<1x256xf32>
    %c0_17 = arith.constant 0 : index
    %c0_18 = arith.constant 0 : index
    %23 = vector.load %arg8[%c0_17, %c0_18] : memref<1x256xf32, #tpu.memory_space<vmem>>, vector<1x256xf32>
    tpu.vector_store %arg8[%c0_17, %c0_18], %22 {strides = array<i32>} : memref<1x256xf32, #tpu.memory_space<vmem>>, vector<1x256xf32>,
    return
  }
  func.func @transform_0(%arg0: i32) -> (i32, i32) {
    %c0_i32 = arith.constant 0 : i32
    %c0_i32_0 = arith.constant 0 : i32
    return %arg0, %c0_i32 : i32, i32
  }
  func.func @transform_1(%arg0: i32) -> (i32, i32) {
    %c0_i32 = arith.constant 0 : i32
    %c0_i32_0 = arith.constant 0 : i32
    %c0_i32_1 = arith.constant 0 : i32
    return %c0_i32, %c0_i32_0 : i32, i32
  }
  func.func @transform_2(%arg0: i32) -> (i32, i32) {
    %c0_i32 = arith.constant 0 : i32
    %c0_i32_0 = arith.constant 0 : i32
    %c0_i32_1 = arith.constant 0 : i32
    return %c0_i32, %c0_i32_0 : i32, i32
  }
  func.func @transform_3(%arg0: i32) -> (i32, i32) {
    %c0_i32 = arith.constant 0 : i32
    %c0_i32_0 = arith.constant 0 : i32
    %c0_i32_1 = arith.constant 0 : i32
    return %c0_i32, %c0_i32_0 : i32, i32
  }
  func.func @transform_4(%arg0: i32) -> (i32, i32) {
    %c0_i32 = arith.constant 0 : i32
    %c0_i32_0 = arith.constant 0 : i32
    %c0_i32_1 = arith.constant 0 : i32
    return %c0_i32, %c0_i32_0 : i32, i32
  }
  func.func @transform_5(%arg0: i32) -> (i32, i32) {
    %c0_i32 = arith.constant 0 : i32
    %c0_i32_0 = arith.constant 0 : i32
    %c0_i32_1 = arith.constant 0 : i32
    return %c0_i32, %c0_i32_0 : i32, i32
  }
  func.func @transform_6(%arg0: i32) -> (i32, i32) {
    %c0_i32 = arith.constant 0 : i32
    %c0_i32_0 = arith.constant 0 : i32
    %c0_i32_1 = arith.constant 0 : i32
    return %c0_i32, %c0_i32_0 : i32, i32
  }
  func.func @transform_7(%arg0: i32) -> (i32, i32) {
    %c0_i32 = arith.constant 0 : i32
    %c0_i32_0 = arith.constant 0 : i32
    return %c0_i32, %arg0 : i32, i32
  }
}

</mosaic_0001>

<llo_original>
// kernel: model3_forward.1
$region0: #{model3_forward.1}
  #allocation0 [shape = 'u32[]', space=smem, size = 0x4, offset = 0x4, fixed_abs, tag = 'smem constant byte address 0x4 - core index']
  #allocation1 [shape = 'u32[72,128]{1,0:T(1,128)}', space=vmem, size = 0x9000, scoped, tag = 'internal scratch']
  #allocation2 [shape = 'f32[1,1]{1,0:T(1,128)S(1)}', space=vmem, size = 0x200, scoped, tag = 'scoped memory for model3_forward.1']
  %s0 = inlined_call_operand.vmem [shape: f32[300,42], index: 0, kind: input, shape index: {}]
  %s1 = inlined_call_operand.vmem [shape: f32[16,42], index: 1, kind: input, shape index: {}]
  %s2 = inlined_call_operand.vmem [shape: f32[16,1], index: 2, kind: input, shape index: {}]
  %s3 = inlined_call_operand.vmem [shape: f32[8,16], index: 3, kind: input, shape index: {}]
  %s4 = inlined_call_operand.vmem [shape: f32[8,1], index: 4, kind: input, shape index: {}]
  %s5 = inlined_call_operand.vmem [shape: f32[8,1], index: 5, kind: input, shape index: {}]
  %s6 = inlined_call_operand.<no memory space> [shape: f32[1,1], index: 6, kind: input, shape index: {}]
  %s7 = inlined_call_operand.hbm [shape: f32[1,300], index: 7, kind: output, shape index: {}]
  %s8 = sld [smem:[#allocation0]]
  $region61: #{model3_forward.1} parent=0
    _
  %s10 = ssub.s32 1, %s8
  %s11 = scalar_select 0, %s10, %s8
  %v12 = vstv %s6
  %13 = vst [vmem:[#allocation2] sm:$0x1] %v12
  $region1: #{model3_forward.1} parent=0
    #allocation3 [shape = 'u8[2048]{0}', space=vmem, size = 0x800, scoped, tag = 'output window, operand 0']
    #allocation4 [shape = 's32[2]{0}', space=sflag, size = 0x8, scoped, tag = 'scoped memory for model3_forward.1']
    %14 = vsyncpa [#allocation4], 0
    %s15 = scalar_lea.sflag [#allocation4], 1
    %16 = vsyncpa %s15, 0
    loop: start=0, step=1, limit=4
    $region2: #{model3_forward.1} parent=1 // loop_pre_header
      _
    $region3: #{model3_forward.1} parent=1 // loop_header
      %s18 = sphi 0, %s22
      %p19 = scmp.ge.s32.totalorder %s18, 4
      %s28 = sphi 0, %s30
      %s31 = sphi 0, %s28
      %s32 = sphi 0, %s31
      %s48 = sphi 0, %s32
      %s52 = sphi 0, %s52
      %s54 = sphi 0, %s52
      %s55 = sphi 0, %s54
      %s69 = sphi 0, %s55
      %s73 = sphi 0, %s73
      %s75 = sphi 0, %s73
      %s76 = sphi 0, %s75
      %s90 = sphi 0, %s76
      %s94 = sphi 0, %s94
      %s96 = sphi 0, %s94
      %s97 = sphi 0, %s96
      %s111 = sphi 0, %s97
      %s115 = sphi 0, %s115
      %s117 = sphi 0, %s115
      %s118 = sphi 0, %s117
      %s132 = sphi 0, %s118
      %s136 = sphi 0, %s136
      %s138 = sphi 0, %s136
      %s139 = sphi 0, %s138
      %s153 = sphi 0, %s139
      %s157 = sphi 0, %s157
      %s159 = sphi 0, %s157
      %s160 = sphi 0, %s159
      %s174 = sphi 0, %s160
      %s180 = sphi 0, %s182
      %s183 = sphi 0, %s180
      %s184 = sphi 0, %s183
      %s200 = sphi 0, %s184
    $region4: #{model3_forward.1} parent=1 // loop_header_branch
      %21 = sbr.rel (%p19) target = $region8
    $region5: #{model3_forward.1} parent=1 // loop_body
      %s23 = ssub.s32 %s18, 1
      %s24 = ssub.s32 %s18, 2
      %s25 = sadd.s32 %s18, 1
      %s26 = ssub.s32 %s18, %s25
      %p27 = scmp.eq.s32.totalorder %s26, 0
      %s29 = sadd.s32 %s28, 1
      %s30 = scalar_select %p27, %s28, %s29
      %p33 = pneg %p27
      %p34 = scmp.eq.s32.totalorder %s18, 1
      %p35 = por %p33, %p34
      %p36 = scmp.ne.s32.totalorder %s28, %s31
      %p37 = scmp.eq.s32.totalorder %s18, 0
      %p38 = por %p36, %p37
      %p39 = scmp.ne.s32.totalorder %s28, %s31
      %p40 = scmp.eq.s32.totalorder %s23, 1
      %p41 = por %p39, %p40
      %p42 = scmp.ne.s32.totalorder %s31, %s32
      %p43 = scmp.eq.s32.totalorder %s23, 0
      %p44 = por %p42, %p43
      %p45 = scmp.ne.s32.totalorder %s31, %s32
      %p46 = scmp.eq.s32.totalorder %s24, 1
      %p47 = por %p45, %p46
      %p49 = scmp.ne.s32.totalorder %s32, %s48
      %p50 = scmp.eq.s32.totalorder %s24, 0
      %p51 = por %p49, %p50
      %s53 = sadd.s32 %s52, 1
      %p56 = scmp.eq.s32.totalorder %s18, 1
      %p57 = scmp.ne.s32.totalorder %s52, %s54
      %p58 = scmp.eq.s32.totalorder %s18, 0
      %p59 = por %p57, %p58
      %p60 = scmp.ne.s32.totalorder %s52, %s54
      %p61 = scmp.eq.s32.totalorder %s23, 1
      %p62 = por %p60, %p61
      %p63 = scmp.ne.s32.totalorder %s54, %s55
      %p64 = scmp.eq.s32.totalorder %s23, 0
      %p65 = por %p63, %p64
      %p66 = scmp.ne.s32.totalorder %s54, %s55
      %p67 = scmp.eq.s32.totalorder %s24, 1
      %p68 = por %p66, %p67
      %p70 = scmp.ne.s32.totalorder %s55, %s69
      %p71 = scmp.eq.s32.totalorder %s24, 0
      %p72 = por %p70, %p71
      %s74 = sadd.s32 %s73, 1
      %p77 = scmp.eq.s32.totalorder %s18, 1
      %p78 = scmp.ne.s32.totalorder %s73, %s75
      %p79 = scmp.eq.s32.totalorder %s18, 0
      %p80 = por %p78, %p79
      %p81 = scmp.ne.s32.totalorder %s73, %s75
      %p82 = scmp.eq.s32.totalorder %s23, 1
      %p83 = por %p81, %p82
      %p84 = scmp.ne.s32.totalorder %s75, %s76
      %p85 = scmp.eq.s32.totalorder %s23, 0
      %p86 = por %p84, %p85
      %p87 = scmp.ne.s32.totalorder %s75, %s76
      %p88 = scmp.eq.s32.totalorder %s24, 1
      %p89 = por %p87, %p88
      %p91 = scmp.ne.s32.totalorder %s76, %s90
      %p92 = scmp.eq.s32.totalorder %s24, 0
      %p93 = por %p91, %p92
      %s95 = sadd.s32 %s94, 1
      %p98 = scmp.eq.s32.totalorder %s18, 1
      %p99 = scmp.ne.s32.totalorder %s94, %s96
      %p100 = scmp.eq.s32.totalorder %s18, 0
      %p101 = por %p99, %p100
      %p102 = scmp.ne.s32.totalorder %s94, %s96
      %p103 = scmp.eq.s32.totalorder %s23, 1
      %p104 = por %p102, %p103
      %p105 = scmp.ne.s32.totalorder %s96, %s97
      %p106 = scmp.eq.s32.totalorder %s23, 0
      %p107 = por %p105, %p106
      %p108 = scmp.ne.s32.totalorder %s96, %s97
      %p109 = scmp.eq.s32.totalorder %s24, 1
      %p110 = por %p108, %p109
      %p112 = scmp.ne.s32.totalorder %s97, %s111
      %p113 = scmp.eq.s32.totalorder %s24, 0
      %p114 = por %p112, %p113
      %s116 = sadd.s32 %s115, 1
      %p119 = scmp.eq.s32.totalorder %s18, 1
      %p120 = scmp.ne.s32.totalorder %s115, %s117
      %p121 = scmp.eq.s32.totalorder %s18, 0
      %p122 = por %p120, %p121
      %p123 = scmp.ne.s32.totalorder %s115, %s117
      %p124 = scmp.eq.s32.totalorder %s23, 1
      %p125 = por %p123, %p124
      %p126 = scmp.ne.s32.totalorder %s117, %s118
      %p127 = scmp.eq.s32.totalorder %s23, 0
      %p128 = por %p126, %p127
      %p129 = scmp.ne.s32.totalorder %s117, %s118
      %p130 = scmp.eq.s32.totalorder %s24, 1
      %p131 = por %p129, %p130
      %p133 = scmp.ne.s32.totalorder %s118, %s132
      %p134 = scmp.eq.s32.totalorder %s24, 0
      %p135 = por %p133, %p134
      %s137 = sadd.s32 %s136, 1
      %p140 = scmp.eq.s32.totalorder %s18, 1
      %p141 = scmp.ne.s32.totalorder %s136, %s138
      %p142 = scmp.eq.s32.totalorder %s18, 0
      %p143 = por %p141, %p142
      %p144 = scmp.ne.s32.totalorder %s136, %s138
      %p145 = scmp.eq.s32.totalorder %s23, 1
      %p146 = por %p144, %p145
      %p147 = scmp.ne.s32.totalorder %s138, %s139
      %p148 = scmp.eq.s32.totalorder %s23, 0
      %p149 = por %p147, %p148
      %p150 = scmp.ne.s32.totalorder %s138, %s139
      %p151 = scmp.eq.s32.totalorder %s24, 1
      %p152 = por %p150, %p151
      %p154 = scmp.ne.s32.totalorder %s139, %s153
      %p155 = scmp.eq.s32.totalorder %s24, 0
      %p156 = por %p154, %p155
      %s158 = sadd.s32 %s157, 1
      %p161 = scmp.eq.s32.totalorder %s18, 1
      %p162 = scmp.ne.s32.totalorder %s157, %s159
      %p163 = scmp.eq.s32.totalorder %s18, 0
      %p164 = por %p162, %p163
      %p165 = scmp.ne.s32.totalorder %s157, %s159
      %p166 = scmp.eq.s32.totalorder %s23, 1
      %p167 = por %p165, %p166
      %p168 = scmp.ne.s32.totalorder %s159, %s160
      %p169 = scmp.eq.s32.totalorder %s23, 0
      %p170 = por %p168, %p169
      %p171 = scmp.ne.s32.totalorder %s159, %s160
      %p172 = scmp.eq.s32.totalorder %s24, 1
      %p173 = por %p171, %p172
      %p175 = scmp.ne.s32.totalorder %s160, %s174
      %p176 = scmp.eq.s32.totalorder %s24, 0
      %p177 = por %p175, %p176
      %s178 = ssub.s32 %s18, %s25
      %p179 = scmp.eq.s32.totalorder %s178, 0
      %s181 = sadd.s32 %s180, 1
      %s182 = scalar_select %p179, %s180, %s181
      %p185 = pneg %p179
      %p186 = scmp.eq.s32.totalorder %s18, 1
      %p187 = por %p185, %p186
      %p188 = scmp.ne.s32.totalorder %s180, %s183
      %p189 = scmp.eq.s32.totalorder %s18, 0
      %p190 = por %p188, %p189
      %p191 = scmp.ne.s32.totalorder %s180, %s183
      %p192 = scmp.eq.s32.totalorder %s23, 1
      %p193 = por %p191, %p192
      %p194 = scmp.ne.s32.totalorder %s183, %s184
      %p195 = scmp.eq.s32.totalorder %s23, 0
      %p196 = por %p194, %p195
      %p197 = scmp.ne.s32.totalorder %s183, %s184
      %p198 = scmp.eq.s32.totalorder %s24, 1
      %p199 = por %p197, %p198
      %p201 = scmp.ne.s32.totalorder %s184, %s200
      %p202 = scmp.eq.s32.totalorder %s24, 0
      %p203 = por %p201, %p202
      %p204 = scmp.le.s32.totalorder 1, %s18
      %p205 = scmp.lt.s32.totalorder %s18, 3
      %p206 = pnand %p204, %p205
      %p207 = pneg %p206
      // Predicated region
      $region9: #{model3_forward.1} parent=5 // pred_check
        _
      $region10: #{model3_forward.1} parent=5 // pred_check_branch
        %209 = sbr.rel (%p206) target = $region12
      $region11: #{model3_forward.1} parent=5 // pred_region
        %s210 = ssub.s32 %s18, 1
        // Predicated region
        $region13: #{model3_forward.1} parent=11 // pred_check
          %p211 = pneg %p65
        $region14: #{model3_forward.1} parent=11 // pred_check_branch
          %213 = sbr.rel (%p211) target = $region16
        $region15: #{model3_forward.1} parent=11 // pred_region
          _
        $region16: #{model3_forward.1} parent=11 // pred_fallthru
          _
        // Predicated region
        $region17: #{model3_forward.1} parent=11 // pred_check
          %p214 = pneg %p86
        $region18: #{model3_forward.1} parent=11 // pred_check_branch
          %216 = sbr.rel (%p214) target = $region20
        $region19: #{model3_forward.1} parent=11 // pred_region
          _
        $region20: #{model3_forward.1} parent=11 // pred_fallthru
          _
        // Predicated region
        $region21: #{model3_forward.1} parent=11 // pred_check
          %p217 = pneg %p107
        $region22: #{model3_forward.1} parent=11 // pred_check_branch
          %219 = sbr.rel (%p217) target = $region24
        $region23: #{model3_forward.1} parent=11 // pred_region
          _
        $region24: #{model3_forward.1} parent=11 // pred_fallthru
          _
        // Predicated region
        $region25: #{model3_forward.1} parent=11 // pred_check
          %p220 = pneg %p128
        $region26: #{model3_forward.1} parent=11 // pred_check_branch
          %222 = sbr.rel (%p220) target = $region28
        $region27: #{model3_forward.1} parent=11 // pred_region
          _
        $region28: #{model3_forward.1} parent=11 // pred_fallthru
          _
        // Predicated region
        $region29: #{model3_forward.1} parent=11 // pred_check
          %p223 = pneg %p149
        $region30: #{model3_forward.1} parent=11 // pred_check_branch
          %225 = sbr.rel (%p223) target = $region32
        $region31: #{model3_forward.1} parent=11 // pred_region
          _
        $region32: #{model3_forward.1} parent=11 // pred_fallthru
          _
        // Predicated region
        $region33: #{model3_forward.1} parent=11 // pred_check
          %p226 = pneg %p170
        $region34: #{model3_forward.1} parent=11 // pred_check_branch
          %228 = sbr.rel (%p226) target = $region36
        $region35: #{model3_forward.1} parent=11 // pred_region
          _
        $region36: #{model3_forward.1} parent=11 // pred_fallthru
          _
      $region12: #{model3_forward.1} parent=5 // pred_fallthru
        _
      %p229 = scmp.lt.s32.totalorder %s18, 2
      // Predicated region
      $region37: #{model3_forward.1} parent=5 // pred_check
        %p230 = pneg %p229
      $region38: #{model3_forward.1} parent=5 // pred_check_branch
        %232 = sbr.rel (%p230) target = $region40
      $region39: #{model3_forward.1} parent=5 // pred_region
        // Predicated region
        $region41: #{model3_forward.1} parent=39 // pred_check
          %p233 = pneg %p38
        $region42: #{model3_forward.1} parent=39 // pred_check_branch
          %235 = sbr.rel (%p233) target = $region44
        $region43: #{model3_forward.1} parent=39 // pred_region
          %s236 = smul.u32 32, %s18
          %s237 = ssub.s32 38, %s236
          %p238 = scmp.lt.s32.totalorder %s237, 32
          %s239 = scalar_select %p238, %s237, 32
          %s240 = smul.u32 8, %s239
          %p241 = scmp.lt.s32.totalorder %s236, 37
          %s242 = scalar_select %p241, %s236, 37
          %s243 = smul.addr %s242, 8
          %s244 = scalar_lea.vmem %s0, %s243
          %s245 = smul.u32 32, %s18
          %s246 = ssub.s32 38, %s245
          %p247 = scmp.lt.s32.totalorder %s246, 32
          %s248 = scalar_select %p247, %s246, 32
          %s249 = smul.u32 8, %s248
        $region44: #{model3_forward.1} parent=39 // pred_fallthru
          _
      $region40: #{model3_forward.1} parent=5 // pred_fallthru
        _
      %p250 = scmp.le.s32.totalorder 1, %s18
      %p251 = scmp.lt.s32.totalorder %s18, 3
      %p252 = pnand %p250, %p251
      %p253 = pneg %p252
      // Predicated region
      $region45: #{model3_forward.1} parent=5 // pred_check
        _
      $region46: #{model3_forward.1} parent=5 // pred_check_branch
        %255 = sbr.rel (%p252) target = $region48
      $region47: #{model3_forward.1} parent=5 // pred_region
        %s256 = ssub.s32 %s18, 1
        %s257 = smul.u32 32, %s23
        %s258 = ssub.s32 38, %s257
        %p259 = scmp.lt.s32.totalorder %s258, 32
        %s260 = scalar_select %p259, %s258, 32
        %s261 = smul.u32 8, %s260
        %p262 = scmp.lt.s32.totalorder %s257, 37
        %s263 = scalar_select %p262, %s257, 37
        %s264 = smul.addr %s263, 8
        %s265 = scalar_lea.vmem %s0, %s264
        %p266 = pneg %p44
        %p267 = pneg %p41
        %p268 = pneg %p65
        %p269 = pneg %p62
        %p270 = pneg %p86
        %p271 = pneg %p83
        %p272 = pneg %p107
        %p273 = pneg %p104
        %p274 = pneg %p128
        %p275 = pneg %p125
        %p276 = pneg %p149
        %p277 = pneg %p146
        %p278 = pneg %p170
        %p279 = pneg %p167
        %p280 = pneg %p196
        %p281 = pneg %p193
        %s282 = sand.u32 %s183, 1
        %s283 = scalar_lea.sflag [#allocation4], %s282
        %s284 = sand.u32 %s183, 1
        %s285 = smul.addr %s284, 2
        %s286 = scalar_lea.vmem [#allocation3], %s285
        %s287 = smul.u32 32, %s23
        %s288 = ssub.s32 38, %s287
        %p289 = scmp.lt.s32.totalorder %s288, 32
        %s290 = scalar_select %p289, %s288, 32
        %s291 = smul.u32 8, %s290
        %p292 = scmp.lt.s32.totalorder %s287, 37
        %s293 = scalar_select %p292, %s287, 37
        %s294 = smul.addr %s293, 8
        %s295 = scalar_lea.vmem %s0, %s294
        %s296 = smul.u32 32, %s23
        %s297 = ssub.s32 38, %s296
        %p298 = scmp.lt.s32.totalorder %s297, 32
        %s299 = scalar_select %p298, %s297, 32
        %s300 = smul.u32 8, %s299
        %s301 = smul.u32 2, %s23
        %s302 = ssub.s32 3, %s301
        %p303 = scmp.lt.s32.totalorder %s302, 2
        %s304 = scalar_select %p303, %s302, 2
        %v305 = vld [vmem:[%s295] sm:$0xff]
        %v306 = vld [vmem:[%s295 + $0x8] sm:$0xff]
        %v307 = vld [vmem:[%s295 + $0x10] sm:$0xff]
        %v308 = vld [vmem:[%s295 + $0x18] sm:$0xff]
        %v309 = vld [vmem:[%s295 + $0x20] sm:$0xff]
        %v310 = vld [vmem:[%s295 + $0x28] sm:$0xff]
        %v311 = vld [vmem:[%s295 + $0x30] sm:$0xff]
        %v312 = vld [vmem:[%s295 + $0x38] sm:$0xff]
        %v313 = vld [vmem:[%s295 + $0x40] sm:$0xff]
        %v314 = vld [vmem:[%s295 + $0x48] sm:$0xff]
        %v315 = vld [vmem:[%s295 + $0x50] sm:$0xff]
        %v316 = vld [vmem:[%s295 + $0x58] sm:$0xff]
        %v317 = vld [vmem:[%s295 + $0x60] sm:$0xff]
        %v318 = vld [vmem:[%s295 + $0x68] sm:$0xff]
        %v319 = vld [vmem:[%s295 + $0x70] sm:$0xff]
        %v320 = vld [vmem:[%s295 + $0x78] sm:$0xff]
        %v321 = vld [vmem:[%s295 + $0x80] sm:$0xff]
        %v322 = vld [vmem:[%s295 + $0x88] sm:$0xff]
        %v323 = vld [vmem:[%s295 + $0x90] sm:$0xff]
        %v324 = vld [vmem:[%s295 + $0x98] sm:$0xff]
        %v325 = vld [vmem:[%s295 + $0xa0] sm:$0xff]
        %v326 = vld [vmem:[%s295 + $0xa8] sm:$0xff]
        %v327 = vld [vmem:[%s295 + $0xb0] sm:$0xff]
        %v328 = vld [vmem:[%s295 + $0xb8] sm:$0xff]
        %v329 = vld [vmem:[%s295 + $0xc0] sm:$0xff]
        %v330 = vld [vmem:[%s295 + $0xc8] sm:$0xff]
        %v331 = vld [vmem:[%s295 + $0xd0] sm:$0xff]
        %v332 = vld [vmem:[%s295 + $0xd8] sm:$0xff]
        %v333 = vld [vmem:[%s295 + $0xe0] sm:$0xff]
        %v334 = vld [vmem:[%s295 + $0xe8] sm:$0xff]
        %v335 = vld [vmem:[%s295 + $0xf0] sm:$0xff]
        %v336 = vld [vmem:[%s295 + $0xf8] sm:$0xff]
        %v337 = vld [vmem:[%s1] sm:$0xff]
        %v338 = vld [vmem:[%s1 + $0x8] sm:$0xff]
        %v339 = vld [vmem:[%s2] sm:$0xff]
        %v340 = vld [vmem:[%s2 + $0x8] sm:$0xff]
        %342 = vset.pattern.permute.xlu0 0
        %343 = vperm.xlu0 %342, %v339
        %v344 = vpop.permute.xlu0 %343
        %347 = vset.pattern.permute.xlu0 0
        %348 = vperm.xlu0 %347, %v340
        %v349 = vpop.permute.xlu0 %348
        %vm351 = vcmask 343040
        %v353 = vsel %vm351, %v337, 0
        %v356 = vsel %vm351, %v338, 0
        %v359 = vsel %vm351, %v305, 0
        %v362 = vsel %vm351, %v306, 0
        %v365 = vsel %vm351, %v307, 0
        %v368 = vsel %vm351, %v308, 0
        %v371 = vsel %vm351, %v309, 0
        %v374 = vsel %vm351, %v310, 0
        %v377 = vsel %vm351, %v311, 0
        %v380 = vsel %vm351, %v312, 0
        %v383 = vsel %vm351, %v313, 0
        %v386 = vsel %vm351, %v314, 0
        %v389 = vsel %vm351, %v315, 0
        %v392 = vsel %vm351, %v316, 0
        %v395 = vsel %vm351, %v317, 0
        %v398 = vsel %vm351, %v318, 0
        %v401 = vsel %vm351, %v319, 0
        %v404 = vsel %vm351, %v320, 0
        %v407 = vsel %vm351, %v321, 0
        %v410 = vsel %vm351, %v322, 0
        %v413 = vsel %vm351, %v323, 0
        %v416 = vsel %vm351, %v324, 0
        %v419 = vsel %vm351, %v325, 0
        %v422 = vsel %vm351, %v326, 0
        %v425 = vsel %vm351, %v327, 0
        %v428 = vsel %vm351, %v328, 0
        %v431 = vsel %vm351, %v329, 0
        %v434 = vsel %vm351, %v330, 0
        %v437 = vsel %vm351, %v331, 0
        %v440 = vsel %vm351, %v332, 0
        %v443 = vsel %vm351, %v333, 0
        %v446 = vsel %vm351, %v334, 0
        %v449 = vsel %vm351, %v335, 0
        %v452 = vsel %vm351, %v336, 0
        %v454 = vand.u32 %v404, 4294901760
        %455 = vmatpush.xpose.msra.mxu0 %v454
        %v456 = vand.u32 %v401, 4294901760
        %457 = vmatpush.xpose.msra.mxu0 %v456
        %v458 = vand.u32 %v398, 4294901760
        %459 = vmatpush.xpose.msra.mxu0 %v458
        %v460 = vand.u32 %v395, 4294901760
        %461 = vmatpush.xpose.msra.mxu0 %v460
        %v462 = vand.u32 %v392, 4294901760
        %463 = vmatpush.xpose.msra.mxu0 %v462
        %v464 = vand.u32 %v389, 4294901760
        %465 = vmatpush.xpose.msra.mxu0 %v464
        %v466 = vand.u32 %v386, 4294901760
        %467 = vmatpush.xpose.msra.mxu0 %v466
        %v468 = vand.u32 %v383, 4294901760
        %469 = vmatpush.xpose.msra.mxu0 %v468
        %v470 = vand.u32 %v380, 4294901760
        %471 = vmatpush.xpose.msra.mxu0 %v470
        %v472 = vand.u32 %v377, 4294901760
        %473 = vmatpush.xpose.msra.mxu0 %v472
        %v474 = vand.u32 %v374, 4294901760
        %475 = vmatpush.xpose.msra.mxu0 %v474
        %v476 = vand.u32 %v371, 4294901760
        %477 = vmatpush.xpose.msra.mxu0 %v476
        %v478 = vand.u32 %v368, 4294901760
        %479 = vmatpush.xpose.msra.mxu0 %v478
        %v480 = vand.u32 %v365, 4294901760
        %481 = vmatpush.xpose.msra.mxu0 %v480
        %v482 = vand.u32 %v362, 4294901760
        %483 = vmatpush.xpose.msra.mxu0 %v482
        %v484 = vand.u32 %v359, 4294901760
        %485 = vmatpush.xpose.msra.mxu0 %v484
        %v486 = vand.u32 %v353, 4294901760
        %v487 = vsub.f32 %v353, %v486
        %v488 = vand.u32 %v487, 4294901760
        %v489 = vsub.f32 %v487, %v488
        %v490 = vand.u32 %v489, 4294901760
        %491 = vmatmul.f32.gmra.mxu0 %v490
        %v492 = vpop.f32.mrf.mxu0
        %v493 = vadd.f32 %v344, %v492
        %v494 = vand.u32 %v356, 4294901760
        %v495 = vsub.f32 %v356, %v494
        %v496 = vand.u32 %v495, 4294901760
        %v497 = vsub.f32 %v495, %v496
        %v498 = vand.u32 %v497, 4294901760
        %499 = vmatmul.f32.gmra.mxu0 %v498
        %v500 = vpop.f32.mrf.mxu0
        %v501 = vadd.f32 %v349, %v500
        %502 = vdwg.mxu0
        %v503 = vand.u32 %v404, 4294901760
        %v504 = vsub.f32 %v404, %v503
        %v505 = vand.u32 %v504, 4294901760
        %v506 = vsub.f32 %v504, %v505
        %v507 = vand.u32 %v506, 4294901760
        %508 = vmatpush.xpose.msra.mxu0 %v507
        %v509 = vand.u32 %v401, 4294901760
        %v510 = vsub.f32 %v401, %v509
        %v511 = vand.u32 %v510, 4294901760
        %v512 = vsub.f32 %v510, %v511
        %v513 = vand.u32 %v512, 4294901760
        %514 = vmatpush.xpose.msra.mxu0 %v513
        %v515 = vand.u32 %v398, 4294901760
        %v516 = vsub.f32 %v398, %v515
        %v517 = vand.u32 %v516, 4294901760
        %v518 = vsub.f32 %v516, %v517
        %v519 = vand.u32 %v518, 4294901760
        %520 = vmatpush.xpose.msra.mxu0 %v519
        %v521 = vand.u32 %v395, 4294901760
        %v522 = vsub.f32 %v395, %v521
        %v523 = vand.u32 %v522, 4294901760
        %v524 = vsub.f32 %v522, %v523
        %v525 = vand.u32 %v524, 4294901760
        %526 = vmatpush.xpose.msra.mxu0 %v525
        %v527 = vand.u32 %v392, 4294901760
        %v528 = vsub.f32 %v392, %v527
        %v529 = vand.u32 %v528, 4294901760
        %v530 = vsub.f32 %v528, %v529
        %v531 = vand.u32 %v530, 4294901760
        %532 = vmatpush.xpose.msra.mxu0 %v531
        %v533 = vand.u32 %v389, 4294901760
        %v534 = vsub.f32 %v389, %v533
        %v535 = vand.u32 %v534, 4294901760
        %v536 = vsub.f32 %v534, %v535
        %v537 = vand.u32 %v536, 4294901760
        %538 = vmatpush.xpose.msra.mxu0 %v537
        %v539 = vand.u32 %v386, 4294901760
        %v540 = vsub.f32 %v386, %v539
        %v541 = vand.u32 %v540, 4294901760
        %v542 = vsub.f32 %v540, %v541
        %v543 = vand.u32 %v542, 4294901760
        %544 = vmatpush.xpose.msra.mxu0 %v543
        %v545 = vand.u32 %v383, 4294901760
        %v546 = vsub.f32 %v383, %v545
        %v547 = vand.u32 %v546, 4294901760
        %v548 = vsub.f32 %v546, %v547
        %v549 = vand.u32 %v548, 4294901760
        %550 = vmatpush.xpose.msra.mxu0 %v549
        %v551 = vand.u32 %v380, 4294901760
        %v552 = vsub.f32 %v380, %v551
        %v553 = vand.u32 %v552, 4294901760
        %v554 = vsub.f32 %v552, %v553
        %v555 = vand.u32 %v554, 4294901760
        %556 = vmatpush.xpose.msra.mxu0 %v555
        %v557 = vand.u32 %v377, 4294901760
        %v558 = vsub.f32 %v377, %v557
        %v559 = vand.u32 %v558, 4294901760
        %v560 = vsub.f32 %v558, %v559
        %v561 = vand.u32 %v560, 4294901760
        %562 = vmatpush.xpose.msra.mxu0 %v561
        %v563 = vand.u32 %v374, 4294901760
        %v564 = vsub.f32 %v374, %v563
        %v565 = vand.u32 %v564, 4294901760
        %v566 = vsub.f32 %v564, %v565
        %v567 = vand.u32 %v566, 4294901760
        %568 = vmatpush.xpose.msra.mxu0 %v567
        %v569 = vand.u32 %v371, 4294901760
        %v570 = vsub.f32 %v371, %v569
        %v571 = vand.u32 %v570, 4294901760
        %v572 = vsub.f32 %v570, %v571
        %v573 = vand.u32 %v572, 4294901760
        %574 = vmatpush.xpose.msra.mxu0 %v573
        %v575 = vand.u32 %v368, 4294901760
        %v576 = vsub.f32 %v368, %v575
        %v577 = vand.u32 %v576, 4294901760
        %v578 = vsub.f32 %v576, %v577
        %v579 = vand.u32 %v578, 4294901760
        %580 = vmatpush.xpose.msra.mxu0 %v579
        %v581 = vand.u32 %v365, 4294901760
        %v582 = vsub.f32 %v365, %v581
        %v583 = vand.u32 %v582, 4294901760
        %v584 = vsub.f32 %v582, %v583
        %v585 = vand.u32 %v584, 4294901760
        %586 = vmatpush.xpose.msra.mxu0 %v585
        %v587 = vand.u32 %v362, 4294901760
        %v588 = vsub.f32 %v362, %v587
        %v589 = vand.u32 %v588, 4294901760
        %v590 = vsub.f32 %v588, %v589
        %v591 = vand.u32 %v590, 4294901760
        %592 = vmatpush.xpose.msra.mxu0 %v591
        %v593 = vand.u32 %v359, 4294901760
        %v594 = vsub.f32 %v359, %v593
        %v595 = vand.u32 %v594, 4294901760
        %v596 = vsub.f32 %v594, %v595
        %v597 = vand.u32 %v596, 4294901760
        %598 = vmatpush.xpose.msra.mxu0 %v597
        %v599 = vand.u32 %v353, 4294901760
        %600 = vmatmul.f32.gmra.mxu0 %v599
        %v601 = vpop.f32.mrf.mxu0
        %v602 = vadd.f32 %v493, %v601
        %v603 = vand.u32 %v356, 4294901760
        %604 = vmatmul.f32.gmra.mxu0 %v603
        %v605 = vpop.f32.mrf.mxu0
        %v606 = vadd.f32 %v501, %v605
        %607 = vdwg.mxu0
        %v608 = vand.u32 %v404, 4294901760
        %v609 = vsub.f32 %v404, %v608
        %610 = vmatpush.xpose.msra.mxu0 %v609
        %v611 = vand.u32 %v401, 4294901760
        %v612 = vsub.f32 %v401, %v611
        %613 = vmatpush.xpose.msra.mxu0 %v612
        %v614 = vand.u32 %v398, 4294901760
        %v615 = vsub.f32 %v398, %v614
        %616 = vmatpush.xpose.msra.mxu0 %v615
        %v617 = vand.u32 %v395, 4294901760
        %v618 = vsub.f32 %v395, %v617
        %619 = vmatpush.xpose.msra.mxu0 %v618
        %v620 = vand.u32 %v392, 4294901760
        %v621 = vsub.f32 %v392, %v620
        %622 = vmatpush.xpose.msra.mxu0 %v621
        %v623 = vand.u32 %v389, 4294901760
        %v624 = vsub.f32 %v389, %v623
        %625 = vmatpush.xpose.msra.mxu0 %v624
        %v626 = vand.u32 %v386, 4294901760
        %v627 = vsub.f32 %v386, %v626
        %628 = vmatpush.xpose.msra.mxu0 %v627
        %v629 = vand.u32 %v383, 4294901760
        %v630 = vsub.f32 %v383, %v629
        %631 = vmatpush.xpose.msra.mxu0 %v630
        %v632 = vand.u32 %v380, 4294901760
        %v633 = vsub.f32 %v380, %v632
        %634 = vmatpush.xpose.msra.mxu0 %v633
        %v635 = vand.u32 %v377, 4294901760
        %v636 = vsub.f32 %v377, %v635
        %637 = vmatpush.xpose.msra.mxu0 %v636
        %v638 = vand.u32 %v374, 4294901760
        %v639 = vsub.f32 %v374, %v638
        %640 = vmatpush.xpose.msra.mxu0 %v639
        %v641 = vand.u32 %v371, 4294901760
        %v642 = vsub.f32 %v371, %v641
        %643 = vmatpush.xpose.msra.mxu0 %v642
        %v644 = vand.u32 %v368, 4294901760
        %v645 = vsub.f32 %v368, %v644
        %646 = vmatpush.xpose.msra.mxu0 %v645
        %v647 = vand.u32 %v365, 4294901760
        %v648 = vsub.f32 %v365, %v647
        %649 = vmatpush.xpose.msra.mxu0 %v648
        %v650 = vand.u32 %v362, 4294901760
        %v651 = vsub.f32 %v362, %v650
        %652 = vmatpush.xpose.msra.mxu0 %v651
        %v653 = vand.u32 %v359, 4294901760
        %v654 = vsub.f32 %v359, %v653
        %655 = vmatpush.xpose.msra.mxu0 %v654
        %v656 = vand.u32 %v353, 4294901760
        %v657 = vsub.f32 %v353, %v656
        %658 = vmatmul.f32.gmra.mxu0 %v657
        %v659 = vpop.f32.mrf.mxu0
        %v660 = vadd.f32 %v602, %v659
        %v661 = vand.u32 %v356, 4294901760
        %v662 = vsub.f32 %v356, %v661
        %663 = vmatmul.f32.gmra.mxu0 %v662
        %v664 = vpop.f32.mrf.mxu0
        %v665 = vadd.f32 %v606, %v664
        %666 = vdwg.mxu0
        %v667 = vand.u32 %v404, 4294901760
        %668 = vmatpush.xpose.msra.mxu0 %v667
        %v669 = vand.u32 %v401, 4294901760
        %670 = vmatpush.xpose.msra.mxu0 %v669
        %v671 = vand.u32 %v398, 4294901760
        %672 = vmatpush.xpose.msra.mxu0 %v671
        %v673 = vand.u32 %v395, 4294901760
        %674 = vmatpush.xpose.msra.mxu0 %v673
        %v675 = vand.u32 %v392, 4294901760
        %676 = vmatpush.xpose.msra.mxu0 %v675
        %v677 = vand.u32 %v389, 4294901760
        %678 = vmatpush.xpose.msra.mxu0 %v677
        %v679 = vand.u32 %v386, 4294901760
        %680 = vmatpush.xpose.msra.mxu0 %v679
        %v681 = vand.u32 %v383, 4294901760
        %682 = vmatpush.xpose.msra.mxu0 %v681
        %v683 = vand.u32 %v380, 4294901760
        %684 = vmatpush.xpose.msra.mxu0 %v683
        %v685 = vand.u32 %v377, 4294901760
        %686 = vmatpush.xpose.msra.mxu0 %v685
        %v687 = vand.u32 %v374, 4294901760
        %688 = vmatpush.xpose.msra.mxu0 %v687
        %v689 = vand.u32 %v371, 4294901760
        %690 = vmatpush.xpose.msra.mxu0 %v689
        %v691 = vand.u32 %v368, 4294901760
        %692 = vmatpush.xpose.msra.mxu0 %v691
        %v693 = vand.u32 %v365, 4294901760
        %694 = vmatpush.xpose.msra.mxu0 %v693
        %v695 = vand.u32 %v362, 4294901760
        %696 = vmatpush.xpose.msra.mxu0 %v695
        %v697 = vand.u32 %v359, 4294901760
        %698 = vmatpush.xpose.msra.mxu0 %v697
        %v699 = vand.u32 %v353, 4294901760
        %v700 = vsub.f32 %v353, %v699
        %v701 = vand.u32 %v700, 4294901760
        %702 = vmatmul.f32.gmra.mxu0 %v701
        %v703 = vpop.f32.mrf.mxu0
        %v704 = vadd.f32 %v660, %v703
        %v705 = vand.u32 %v356, 4294901760
        %v706 = vsub.f32 %v356, %v705
        %v707 = vand.u32 %v706, 4294901760
        %708 = vmatmul.f32.gmra.mxu0 %v707
        %v709 = vpop.f32.mrf.mxu0
        %v710 = vadd.f32 %v665, %v709
        %711 = vdwg.mxu0
        %v712 = vand.u32 %v404, 4294901760
        %v713 = vsub.f32 %v404, %v712
        %v714 = vand.u32 %v713, 4294901760
        %715 = vmatpush.xpose.msra.mxu0 %v714
        %v716 = vand.u32 %v401, 4294901760
        %v717 = vsub.f32 %v401, %v716
        %v718 = vand.u32 %v717, 4294901760
        %719 = vmatpush.xpose.msra.mxu0 %v718
        %v720 = vand.u32 %v398, 4294901760
        %v721 = vsub.f32 %v398, %v720
        %v722 = vand.u32 %v721, 4294901760
        %723 = vmatpush.xpose.msra.mxu0 %v722
        %v724 = vand.u32 %v395, 4294901760
        %v725 = vsub.f32 %v395, %v724
        %v726 = vand.u32 %v725, 4294901760
        %727 = vmatpush.xpose.msra.mxu0 %v726
        %v728 = vand.u32 %v392, 4294901760
        %v729 = vsub.f32 %v392, %v728
        %v730 = vand.u32 %v729, 4294901760
        %731 = vmatpush.xpose.msra.mxu0 %v730
        %v732 = vand.u32 %v389, 4294901760
        %v733 = vsub.f32 %v389, %v732
        %v734 = vand.u32 %v733, 4294901760
        %735 = vmatpush.xpose.msra.mxu0 %v734
        %v736 = vand.u32 %v386, 4294901760
        %v737 = vsub.f32 %v386, %v736
        %v738 = vand.u32 %v737, 4294901760
        %739 = vmatpush.xpose.msra.mxu0 %v738
        %v740 = vand.u32 %v383, 4294901760
        %v741 = vsub.f32 %v383, %v740
        %v742 = vand.u32 %v741, 4294901760
        %743 = vmatpush.xpose.msra.mxu0 %v742
        %v744 = vand.u32 %v380, 4294901760
        %v745 = vsub.f32 %v380, %v744
        %v746 = vand.u32 %v745, 4294901760
        %747 = vmatpush.xpose.msra.mxu0 %v746
        %v748 = vand.u32 %v377, 4294901760
        %v749 = vsub.f32 %v377, %v748
        %v750 = vand.u32 %v749, 4294901760
        %751 = vmatpush.xpose.msra.mxu0 %v750
        %v752 = vand.u32 %v374, 4294901760
        %v753 = vsub.f32 %v374, %v752
        %v754 = vand.u32 %v753, 4294901760
        %755 = vmatpush.xpose.msra.mxu0 %v754
        %v756 = vand.u32 %v371, 4294901760
        %v757 = vsub.f32 %v371, %v756
        %v758 = vand.u32 %v757, 4294901760
        %759 = vmatpush.xpose.msra.mxu0 %v758
        %v760 = vand.u32 %v368, 4294901760
        %v761 = vsub.f32 %v368, %v760
        %v762 = vand.u32 %v761, 4294901760
        %763 = vmatpush.xpose.msra.mxu0 %v762
        %v764 = vand.u32 %v365, 4294901760
        %v765 = vsub.f32 %v365, %v764
        %v766 = vand.u32 %v765, 4294901760
        %767 = vmatpush.xpose.msra.mxu0 %v766
        %v768 = vand.u32 %v362, 4294901760
        %v769 = vsub.f32 %v362, %v768
        %v770 = vand.u32 %v769, 4294901760
        %771 = vmatpush.xpose.msra.mxu0 %v770
        %v772 = vand.u32 %v359, 4294901760
        %v773 = vsub.f32 %v359, %v772
        %v774 = vand.u32 %v773, 4294901760
        %775 = vmatpush.xpose.msra.mxu0 %v774
        %v776 = vand.u32 %v353, 4294901760
        %777 = vmatmul.f32.gmra.mxu0 %v776
        %v778 = vpop.f32.mrf.mxu0
        %v779 = vadd.f32 %v704, %v778
        %v780 = vand.u32 %v356, 4294901760
        %781 = vmatmul.f32.gmra.mxu0 %v780
        %v782 = vpop.f32.mrf.mxu0
        %v783 = vadd.f32 %v710, %v782
        %784 = vdwg.mxu0
        %v785 = vand.u32 %v404, 4294901760
        %786 = vmatpush.xpose.msra.mxu0 %v785
        %v787 = vand.u32 %v401, 4294901760
        %788 = vmatpush.xpose.msra.mxu0 %v787
        %v789 = vand.u32 %v398, 4294901760
        %790 = vmatpush.xpose.msra.mxu0 %v789
        %v791 = vand.u32 %v395, 4294901760
        %792 = vmatpush.xpose.msra.mxu0 %v791
        %v793 = vand.u32 %v392, 4294901760
        %794 = vmatpush.xpose.msra.mxu0 %v793
        %v795 = vand.u32 %v389, 4294901760
        %796 = vmatpush.xpose.msra.mxu0 %v795
        %v797 = vand.u32 %v386, 4294901760
        %798 = vmatpush.xpose.msra.mxu0 %v797
        %v799 = vand.u32 %v383, 4294901760
        %800 = vmatpush.xpose.msra.mxu0 %v799
        %v801 = vand.u32 %v380, 4294901760
        %802 = vmatpush.xpose.msra.mxu0 %v801
        %v803 = vand.u32 %v377, 4294901760
        %804 = vmatpush.xpose.msra.mxu0 %v803
        %v805 = vand.u32 %v374, 4294901760
        %806 = vmatpush.xpose.msra.mxu0 %v805
        %v807 = vand.u32 %v371, 4294901760
        %808 = vmatpush.xpose.msra.mxu0 %v807
        %v809 = vand.u32 %v368, 4294901760
        %810 = vmatpush.xpose.msra.mxu0 %v809
        %v811 = vand.u32 %v365, 4294901760
        %812 = vmatpush.xpose.msra.mxu0 %v811
        %v813 = vand.u32 %v362, 4294901760
        %814 = vmatpush.xpose.msra.mxu0 %v813
        %v815 = vand.u32 %v359, 4294901760
        %816 = vmatpush.xpose.msra.mxu0 %v815
        %v817 = vand.u32 %v353, 4294901760
        %818 = vmatmul.f32.gmra.mxu0 %v817
        %v819 = vpop.f32.mrf.mxu0
        %v820 = vadd.f32 %v779, %v819
        %v821 = vand.u32 %v356, 4294901760
        %822 = vmatmul.f32.gmra.mxu0 %v821
        %v823 = vpop.f32.mrf.mxu0
        %v824 = vadd.f32 %v783, %v823
        %825 = vdwg.mxu0
        %v826 = vand.u32 %v452, 4294901760
        %827 = vmatpush.xpose.msra.mxu0 %v826
        %v828 = vand.u32 %v449, 4294901760
        %829 = vmatpush.xpose.msra.mxu0 %v828
        %v830 = vand.u32 %v446, 4294901760
        %831 = vmatpush.xpose.msra.mxu0 %v830
        %v832 = vand.u32 %v443, 4294901760
        %833 = vmatpush.xpose.msra.mxu0 %v832
        %v834 = vand.u32 %v440, 4294901760
        %835 = vmatpush.xpose.msra.mxu0 %v834
        %v836 = vand.u32 %v437, 4294901760
        %837 = vmatpush.xpose.msra.mxu0 %v836
        %v838 = vand.u32 %v434, 4294901760
        %839 = vmatpush.xpose.msra.mxu0 %v838
        %v840 = vand.u32 %v431, 4294901760
        %841 = vmatpush.xpose.msra.mxu0 %v840
        %v842 = vand.u32 %v428, 4294901760
        %843 = vmatpush.xpose.msra.mxu0 %v842
        %v844 = vand.u32 %v425, 4294901760
        %845 = vmatpush.xpose.msra.mxu0 %v844
        %v846 = vand.u32 %v422, 4294901760
        %847 = vmatpush.xpose.msra.mxu0 %v846
        %v848 = vand.u32 %v419, 4294901760
        %849 = vmatpush.xpose.msra.mxu0 %v848
        %v850 = vand.u32 %v416, 4294901760
        %851 = vmatpush.xpose.msra.mxu0 %v850
        %v852 = vand.u32 %v413, 4294901760
        %853 = vmatpush.xpose.msra.mxu0 %v852
        %v854 = vand.u32 %v410, 4294901760
        %855 = vmatpush.xpose.msra.mxu0 %v854
        %v856 = vand.u32 %v407, 4294901760
        %857 = vmatpush.xpose.msra.mxu0 %v856
        %v858 = vand.u32 %v353, 4294901760
        %v859 = vsub.f32 %v353, %v858
        %v860 = vand.u32 %v859, 4294901760
        %v861 = vsub.f32 %v859, %v860
        %v862 = vand.u32 %v861, 4294901760
        %863 = vmatmul.f32.gmra.mxu0 %v862
        %v864 = vpop.f32.mrf.mxu0
        %v865 = vadd.f32 %v344, %v864
        %v866 = vand.u32 %v356, 4294901760
        %v867 = vsub.f32 %v356, %v866
        %v868 = vand.u32 %v867, 4294901760
        %v869 = vsub.f32 %v867, %v868
        %v870 = vand.u32 %v869, 4294901760
        %871 = vmatmul.f32.gmra.mxu0 %v870
        %v872 = vpop.f32.mrf.mxu0
        %v873 = vadd.f32 %v349, %v872
        %874 = vdwg.mxu0
        %v875 = vand.u32 %v452, 4294901760
        %v876 = vsub.f32 %v452, %v875
        %v877 = vand.u32 %v876, 4294901760
        %v878 = vsub.f32 %v876, %v877
        %v879 = vand.u32 %v878, 4294901760
        %880 = vmatpush.xpose.msra.mxu0 %v879
        %v881 = vand.u32 %v449, 4294901760
        %v882 = vsub.f32 %v449, %v881
        %v883 = vand.u32 %v882, 4294901760
        %v884 = vsub.f32 %v882, %v883
        %v885 = vand.u32 %v884, 4294901760
        %886 = vmatpush.xpose.msra.mxu0 %v885
        %v887 = vand.u32 %v446, 4294901760
        %v888 = vsub.f32 %v446, %v887
        %v889 = vand.u32 %v888, 4294901760
        %v890 = vsub.f32 %v888, %v889
        %v891 = vand.u32 %v890, 4294901760
        %892 = vmatpush.xpose.msra.mxu0 %v891
        %v893 = vand.u32 %v443, 4294901760
        %v894 = vsub.f32 %v443, %v893
        %v895 = vand.u32 %v894, 4294901760
        %v896 = vsub.f32 %v894, %v895
        %v897 = vand.u32 %v896, 4294901760
        %898 = vmatpush.xpose.msra.mxu0 %v897
        %v899 = vand.u32 %v440, 4294901760
        %v900 = vsub.f32 %v440, %v899
        %v901 = vand.u32 %v900, 4294901760
        %v902 = vsub.f32 %v900, %v901
        %v903 = vand.u32 %v902, 4294901760
        %904 = vmatpush.xpose.msra.mxu0 %v903
        %v905 = vand.u32 %v437, 4294901760
        %v906 = vsub.f32 %v437, %v905
        %v907 = vand.u32 %v906, 4294901760
        %v908 = vsub.f32 %v906, %v907
        %v909 = vand.u32 %v908, 4294901760
        %910 = vmatpush.xpose.msra.mxu0 %v909
        %v911 = vand.u32 %v434, 4294901760
        %v912 = vsub.f32 %v434, %v911
        %v913 = vand.u32 %v912, 4294901760
        %v914 = vsub.f32 %v912, %v913
        %v915 = vand.u32 %v914, 4294901760
        %916 = vmatpush.xpose.msra.mxu0 %v915
        %v917 = vand.u32 %v431, 4294901760
        %v918 = vsub.f32 %v431, %v917
        %v919 = vand.u32 %v918, 4294901760
        %v920 = vsub.f32 %v918, %v919
        %v921 = vand.u32 %v920, 4294901760
        %922 = vmatpush.xpose.msra.mxu0 %v921
        %v923 = vand.u32 %v428, 4294901760
        %v924 = vsub.f32 %v428, %v923
        %v925 = vand.u32 %v924, 4294901760
        %v926 = vsub.f32 %v924, %v925
        %v927 = vand.u32 %v926, 4294901760
        %928 = vmatpush.xpose.msra.mxu0 %v927
        %v929 = vand.u32 %v425, 4294901760
        %v930 = vsub.f32 %v425, %v929
        %v931 = vand.u32 %v930, 4294901760
        %v932 = vsub.f32 %v930, %v931
        %v933 = vand.u32 %v932, 4294901760
        %934 = vmatpush.xpose.msra.mxu0 %v933
        %v935 = vand.u32 %v422, 4294901760
        %v936 = vsub.f32 %v422, %v935
        %v937 = vand.u32 %v936, 4294901760
        %v938 = vsub.f32 %v936, %v937
        %v939 = vand.u32 %v938, 4294901760
        %940 = vmatpush.xpose.msra.mxu0 %v939
        %v941 = vand.u32 %v419, 4294901760
        %v942 = vsub.f32 %v419, %v941
        %v943 = vand.u32 %v942, 4294901760
        %v944 = vsub.f32 %v942, %v943
        %v945 = vand.u32 %v944, 4294901760
        %946 = vmatpush.xpose.msra.mxu0 %v945
        %v947 = vand.u32 %v416, 4294901760
        %v948 = vsub.f32 %v416, %v947
        %v949 = vand.u32 %v948, 4294901760
        %v950 = vsub.f32 %v948, %v949
        %v951 = vand.u32 %v950, 4294901760
        %952 = vmatpush.xpose.msra.mxu0 %v951
        %v953 = vand.u32 %v413, 4294901760
        %v954 = vsub.f32 %v413, %v953
        %v955 = vand.u32 %v954, 4294901760
        %v956 = vsub.f32 %v954, %v955
        %v957 = vand.u32 %v956, 4294901760
        %958 = vmatpush.xpose.msra.mxu0 %v957
        %v959 = vand.u32 %v410, 4294901760
        %v960 = vsub.f32 %v410, %v959
        %v961 = vand.u32 %v960, 4294901760
        %v962 = vsub.f32 %v960, %v961
        %v963 = vand.u32 %v962, 4294901760
        %964 = vmatpush.xpose.msra.mxu0 %v963
        %v965 = vand.u32 %v407, 4294901760
        %v966 = vsub.f32 %v407, %v965
        %v967 = vand.u32 %v966, 4294901760
        %v968 = vsub.f32 %v966, %v967
        %v969 = vand.u32 %v968, 4294901760
        %970 = vmatpush.xpose.msra.mxu0 %v969
        %v971 = vand.u32 %v353, 4294901760
        %972 = vmatmul.f32.gmra.mxu0 %v971
        %v973 = vpop.f32.mrf.mxu0
        %v974 = vadd.f32 %v865, %v973
        %v975 = vand.u32 %v356, 4294901760
        %976 = vmatmul.f32.gmra.mxu0 %v975
        %v977 = vpop.f32.mrf.mxu0
        %v978 = vadd.f32 %v873, %v977
        %979 = vdwg.mxu0
        %v980 = vand.u32 %v452, 4294901760
        %v981 = vsub.f32 %v452, %v980
        %982 = vmatpush.xpose.msra.mxu0 %v981
        %v983 = vand.u32 %v449, 4294901760
        %v984 = vsub.f32 %v449, %v983
        %985 = vmatpush.xpose.msra.mxu0 %v984
        %v986 = vand.u32 %v446, 4294901760
        %v987 = vsub.f32 %v446, %v986
        %988 = vmatpush.xpose.msra.mxu0 %v987
        %v989 = vand.u32 %v443, 4294901760
        %v990 = vsub.f32 %v443, %v989
        %991 = vmatpush.xpose.msra.mxu0 %v990
        %v992 = vand.u32 %v440, 4294901760
        %v993 = vsub.f32 %v440, %v992
        %994 = vmatpush.xpose.msra.mxu0 %v993
        %v995 = vand.u32 %v437, 4294901760
        %v996 = vsub.f32 %v437, %v995
        %997 = vmatpush.xpose.msra.mxu0 %v996
        %v998 = vand.u32 %v434, 4294901760
        %v999 = vsub.f32 %v434, %v998
        %1000 = vmatpush.xpose.msra.mxu0 %v999
        %v1001 = vand.u32 %v431, 4294901760
        %v1002 = vsub.f32 %v431, %v1001
        %1003 = vmatpush.xpose.msra.mxu0 %v1002
        %v1004 = vand.u32 %v428, 4294901760
        %v1005 = vsub.f32 %v428, %v1004
        %1006 = vmatpush.xpose.msra.mxu0 %v1005
        %v1007 = vand.u32 %v425, 4294901760
        %v1008 = vsub.f32 %v425, %v1007
        %1009 = vmatpush.xpose.msra.mxu0 %v1008
        %v1010 = vand.u32 %v422, 4294901760
        %v1011 = vsub.f32 %v422, %v1010
        %1012 = vmatpush.xpose.msra.mxu0 %v1011
        %v1013 = vand.u32 %v419, 4294901760
        %v1014 = vsub.f32 %v419, %v1013
        %1015 = vmatpush.xpose.msra.mxu0 %v1014
        %v1016 = vand.u32 %v416, 4294901760
        %v1017 = vsub.f32 %v416, %v1016
        %1018 = vmatpush.xpose.msra.mxu0 %v1017
        %v1019 = vand.u32 %v413, 4294901760
        %v1020 = vsub.f32 %v413, %v1019
        %1021 = vmatpush.xpose.msra.mxu0 %v1020
        %v1022 = vand.u32 %v410, 4294901760
        %v1023 = vsub.f32 %v410, %v1022
        %1024 = vmatpush.xpose.msra.mxu0 %v1023
        %v1025 = vand.u32 %v407, 4294901760
        %v1026 = vsub.f32 %v407, %v1025
        %1027 = vmatpush.xpose.msra.mxu0 %v1026
        %v1028 = vand.u32 %v353, 4294901760
        %v1029 = vsub.f32 %v353, %v1028
        %1030 = vmatmul.f32.gmra.mxu0 %v1029
        %v1031 = vpop.f32.mrf.mxu0
        %v1032 = vadd.f32 %v974, %v1031
        %v1033 = vand.u32 %v356, 4294901760
        %v1034 = vsub.f32 %v356, %v1033
        %1035 = vmatmul.f32.gmra.mxu0 %v1034
        %v1036 = vpop.f32.mrf.mxu0
        %v1037 = vadd.f32 %v978, %v1036
        %1038 = vdwg.mxu0
        %v1039 = vand.u32 %v452, 4294901760
        %1040 = vmatpush.xpose.msra.mxu0 %v1039
        %v1041 = vand.u32 %v449, 4294901760
        %1042 = vmatpush.xpose.msra.mxu0 %v1041
        %v1043 = vand.u32 %v446, 4294901760
        %1044 = vmatpush.xpose.msra.mxu0 %v1043
        %v1045 = vand.u32 %v443, 4294901760
        %1046 = vmatpush.xpose.msra.mxu0 %v1045
        %v1047 = vand.u32 %v440, 4294901760
        %1048 = vmatpush.xpose.msra.mxu0 %v1047
        %v1049 = vand.u32 %v437, 4294901760
        %1050 = vmatpush.xpose.msra.mxu0 %v1049
        %v1051 = vand.u32 %v434, 4294901760
        %1052 = vmatpush.xpose.msra.mxu0 %v1051
        %v1053 = vand.u32 %v431, 4294901760
        %1054 = vmatpush.xpose.msra.mxu0 %v1053
        %v1055 = vand.u32 %v428, 4294901760
        %1056 = vmatpush.xpose.msra.mxu0 %v1055
        %v1057 = vand.u32 %v425, 4294901760
        %1058 = vmatpush.xpose.msra.mxu0 %v1057
        %v1059 = vand.u32 %v422, 4294901760
        %1060 = vmatpush.xpose.msra.mxu0 %v1059
        %v1061 = vand.u32 %v419, 4294901760
        %1062 = vmatpush.xpose.msra.mxu0 %v1061
        %v1063 = vand.u32 %v416, 4294901760
        %1064 = vmatpush.xpose.msra.mxu0 %v1063
        %v1065 = vand.u32 %v413, 4294901760
        %1066 = vmatpush.xpose.msra.mxu0 %v1065
        %v1067 = vand.u32 %v410, 4294901760
        %1068 = vmatpush.xpose.msra.mxu0 %v1067
        %v1069 = vand.u32 %v407, 4294901760
        %1070 = vmatpush.xpose.msra.mxu0 %v1069
        %v1071 = vand.u32 %v353, 4294901760
        %v1072 = vsub.f32 %v353, %v1071
        %v1073 = vand.u32 %v1072, 4294901760
        %1074 = vmatmul.f32.gmra.mxu0 %v1073
        %v1075 = vpop.f32.mrf.mxu0
        %v1076 = vadd.f32 %v1032, %v1075
        %v1077 = vand.u32 %v356, 4294901760
        %v1078 = vsub.f32 %v356, %v1077
        %v1079 = vand.u32 %v1078, 4294901760
        %1080 = vmatmul.f32.gmra.mxu0 %v1079
        %v1081 = vpop.f32.mrf.mxu0
        %v1082 = vadd.f32 %v1037, %v1081
        %1083 = vdwg.mxu0
        %v1084 = vand.u32 %v452, 4294901760
        %v1085 = vsub.f32 %v452, %v1084
        %v1086 = vand.u32 %v1085, 4294901760
        %1087 = vmatpush.xpose.msra.mxu0 %v1086
        %v1088 = vand.u32 %v449, 4294901760
        %v1089 = vsub.f32 %v449, %v1088
        %v1090 = vand.u32 %v1089, 4294901760
        %1091 = vmatpush.xpose.msra.mxu0 %v1090
        %v1092 = vand.u32 %v446, 4294901760
        %v1093 = vsub.f32 %v446, %v1092
        %v1094 = vand.u32 %v1093, 4294901760
        %1095 = vmatpush.xpose.msra.mxu0 %v1094
        %v1096 = vand.u32 %v443, 4294901760
        %v1097 = vsub.f32 %v443, %v1096
        %v1098 = vand.u32 %v1097, 4294901760
        %1099 = vmatpush.xpose.msra.mxu0 %v1098
        %v1100 = vand.u32 %v440, 4294901760
        %v1101 = vsub.f32 %v440, %v1100
        %v1102 = vand.u32 %v1101, 4294901760
        %1103 = vmatpush.xpose.msra.mxu0 %v1102
        %v1104 = vand.u32 %v437, 4294901760
        %v1105 = vsub.f32 %v437, %v1104
        %v1106 = vand.u32 %v1105, 4294901760
        %1107 = vmatpush.xpose.msra.mxu0 %v1106
        %v1108 = vand.u32 %v434, 4294901760
        %v1109 = vsub.f32 %v434, %v1108
        %v1110 = vand.u32 %v1109, 4294901760
        %1111 = vmatpush.xpose.msra.mxu0 %v1110
        %v1112 = vand.u32 %v431, 4294901760
        %v1113 = vsub.f32 %v431, %v1112
        %v1114 = vand.u32 %v1113, 4294901760
        %1115 = vmatpush.xpose.msra.mxu0 %v1114
        %v1116 = vand.u32 %v428, 4294901760
        %v1117 = vsub.f32 %v428, %v1116
        %v1118 = vand.u32 %v1117, 4294901760
        %1119 = vmatpush.xpose.msra.mxu0 %v1118
        %v1120 = vand.u32 %v425, 4294901760
        %v1121 = vsub.f32 %v425, %v1120
        %v1122 = vand.u32 %v1121, 4294901760
        %1123 = vmatpush.xpose.msra.mxu0 %v1122
        %v1124 = vand.u32 %v422, 4294901760
        %v1125 = vsub.f32 %v422, %v1124
        %v1126 = vand.u32 %v1125, 4294901760
        %1127 = vmatpush.xpose.msra.mxu0 %v1126
        %v1128 = vand.u32 %v419, 4294901760
        %v1129 = vsub.f32 %v419, %v1128
        %v1130 = vand.u32 %v1129, 4294901760
        %1131 = vmatpush.xpose.msra.mxu0 %v1130
        %v1132 = vand.u32 %v416, 4294901760
        %v1133 = vsub.f32 %v416, %v1132
        %v1134 = vand.u32 %v1133, 4294901760
        %1135 = vmatpush.xpose.msra.mxu0 %v1134
        %v1136 = vand.u32 %v413, 4294901760
        %v1137 = vsub.f32 %v413, %v1136
        %v1138 = vand.u32 %v1137, 4294901760
        %1139 = vmatpush.xpose.msra.mxu0 %v1138
        %v1140 = vand.u32 %v410, 4294901760
        %v1141 = vsub.f32 %v410, %v1140
        %v1142 = vand.u32 %v1141, 4294901760
        %1143 = vmatpush.xpose.msra.mxu0 %v1142
        %v1144 = vand.u32 %v407, 4294901760
        %v1145 = vsub.f32 %v407, %v1144
        %v1146 = vand.u32 %v1145, 4294901760
        %1147 = vmatpush.xpose.msra.mxu0 %v1146
        %v1148 = vand.u32 %v353, 4294901760
        %1149 = vmatmul.f32.gmra.mxu0 %v1148
        %v1150 = vpop.f32.mrf.mxu0
        %v1151 = vadd.f32 %v1076, %v1150
        %v1152 = vand.u32 %v356, 4294901760
        %1153 = vmatmul.f32.gmra.mxu0 %v1152
        %v1154 = vpop.f32.mrf.mxu0
        %v1155 = vadd.f32 %v1082, %v1154
        %1156 = vdwg.mxu0
        %v1157 = vand.u32 %v452, 4294901760
        %1158 = vmatpush.xpose.msra.mxu0 %v1157
        %v1159 = vand.u32 %v449, 4294901760
        %1160 = vmatpush.xpose.msra.mxu0 %v1159
        %v1161 = vand.u32 %v446, 4294901760
        %1162 = vmatpush.xpose.msra.mxu0 %v1161
        %v1163 = vand.u32 %v443, 4294901760
        %1164 = vmatpush.xpose.msra.mxu0 %v1163
        %v1165 = vand.u32 %v440, 4294901760
        %1166 = vmatpush.xpose.msra.mxu0 %v1165
        %v1167 = vand.u32 %v437, 4294901760
        %1168 = vmatpush.xpose.msra.mxu0 %v1167
        %v1169 = vand.u32 %v434, 4294901760
        %1170 = vmatpush.xpose.msra.mxu0 %v1169
        %v1171 = vand.u32 %v431, 4294901760
        %1172 = vmatpush.xpose.msra.mxu0 %v1171
        %v1173 = vand.u32 %v428, 4294901760
        %1174 = vmatpush.xpose.msra.mxu0 %v1173
        %v1175 = vand.u32 %v425, 4294901760
        %1176 = vmatpush.xpose.msra.mxu0 %v1175
        %v1177 = vand.u32 %v422, 4294901760
        %1178 = vmatpush.xpose.msra.mxu0 %v1177
        %v1179 = vand.u32 %v419, 4294901760
        %1180 = vmatpush.xpose.msra.mxu0 %v1179
        %v1181 = vand.u32 %v416, 4294901760
        %1182 = vmatpush.xpose.msra.mxu0 %v1181
        %v1183 = vand.u32 %v413, 4294901760
        %1184 = vmatpush.xpose.msra.mxu0 %v1183
        %v1185 = vand.u32 %v410, 4294901760
        %1186 = vmatpush.xpose.msra.mxu0 %v1185
        %v1187 = vand.u32 %v407, 4294901760
        %1188 = vmatpush.xpose.msra.mxu0 %v1187
        %v1189 = vand.u32 %v353, 4294901760
        %1190 = vmatmul.f32.gmra.mxu0 %v1189
        %v1191 = vpop.f32.mrf.mxu0
        %v1192 = vadd.f32 %v1151, %v1191
        %v1193 = vand.u32 %v356, 4294901760
        %1194 = vmatmul.f32.gmra.mxu0 %v1193
        %v1195 = vpop.f32.mrf.mxu0
        %v1196 = vadd.f32 %v1155, %v1195
        %1197 = vdwg.mxu0
        %v1198 = vmax.f32 %v820, 0.0
        %v1199 = vmax.f32 %v1192, 0.0
        %v1200 = vmax.f32 %v824, 0.0
        %v1201 = vmax.f32 %v1196, 0.0
        %v1202 = vld [vmem:[%s3] sm:$0xff]
        %v1203 = vld [vmem:[%s4] sm:$0xff]
        %1205 = vset.pattern.permute.xlu0 0
        %1206 = vperm.xlu0 %1205, %v1203
        %v1207 = vpop.permute.xlu0 %1206
        %vm1209 = vcmask 130048
        %v1211 = vsel %vm1209, %v1202, 0
        %1213 = vmatpush.msra.mxu0 0.0
        %1214 = vmatpush.msra.mxu0 0.0
        %1215 = vmatpush.msra.mxu0 0.0
        %1216 = vmatpush.msra.mxu0 0.0
        %1217 = vmatpush.msra.mxu0 0.0
        %1218 = vmatpush.msra.mxu0 0.0
        %1219 = vmatpush.msra.mxu0 0.0
        %1220 = vmatpush.msra.mxu0 0.0
        %1221 = vmatpush.msra.mxu0 0.0
        %1222 = vmatpush.msra.mxu0 0.0
        %1223 = vmatpush.msra.mxu0 0.0
        %1224 = vmatpush.msra.mxu0 0.0
        %1225 = vmatpush.msra.mxu0 0.0
        %1226 = vmatpush.msra.mxu0 0.0
        %v1227 = vand.u32 %v1200, 4294901760
        %1228 = vmatpush.msra.mxu0 %v1227
        %v1229 = vand.u32 %v1198, 4294901760
        %1230 = vmatpush.msra.mxu0 %v1229
        %v1231 = vand.u32 %v1211, 4294901760
        %v1232 = vsub.f32 %v1211, %v1231
        %v1233 = vand.u32 %v1232, 4294901760
        %v1234 = vsub.f32 %v1232, %v1233
        %v1235 = vand.u32 %v1234, 4294901760
        %1236 = vmatmul.f32.gmra.mxu0 %v1235
        %v1237 = vpop.f32.mrf.mxu0
        %v1238 = vadd.f32 %v1207, %v1237
        %1239 = vdwg.mxu0
        %1240 = vmatpush.msra.mxu0 0.0
        %1241 = vmatpush.msra.mxu0 0.0
        %1242 = vmatpush.msra.mxu0 0.0
        %1243 = vmatpush.msra.mxu0 0.0
        %1244 = vmatpush.msra.mxu0 0.0
        %1245 = vmatpush.msra.mxu0 0.0
        %1246 = vmatpush.msra.mxu0 0.0
        %1247 = vmatpush.msra.mxu0 0.0
        %1248 = vmatpush.msra.mxu0 0.0
        %1249 = vmatpush.msra.mxu0 0.0
        %1250 = vmatpush.msra.mxu0 0.0
        %1251 = vmatpush.msra.mxu0 0.0
        %1252 = vmatpush.msra.mxu0 0.0
        %1253 = vmatpush.msra.mxu0 0.0
        %v1254 = vand.u32 %v1200, 4294901760
        %v1255 = vsub.f32 %v1200, %v1254
        %v1256 = vand.u32 %v1255, 4294901760
        %v1257 = vsub.f32 %v1255, %v1256
        %v1258 = vand.u32 %v1257, 4294901760
        %1259 = vmatpush.msra.mxu0 %v1258
        %v1260 = vand.u32 %v1198, 4294901760
        %v1261 = vsub.f32 %v1198, %v1260
        %v1262 = vand.u32 %v1261, 4294901760
        %v1263 = vsub.f32 %v1261, %v1262
        %v1264 = vand.u32 %v1263, 4294901760
        %1265 = vmatpush.msra.mxu0 %v1264
        %v1266 = vand.u32 %v1211, 4294901760
        %1267 = vmatmul.f32.gmra.mxu0 %v1266
        %v1268 = vpop.f32.mrf.mxu0
        %v1269 = vadd.f32 %v1238, %v1268
        %1270 = vdwg.mxu0
        %1271 = vmatpush.msra.mxu0 0.0
        %1272 = vmatpush.msra.mxu0 0.0
        %1273 = vmatpush.msra.mxu0 0.0
        %1274 = vmatpush.msra.mxu0 0.0
        %1275 = vmatpush.msra.mxu0 0.0
        %1276 = vmatpush.msra.mxu0 0.0
        %1277 = vmatpush.msra.mxu0 0.0
        %1278 = vmatpush.msra.mxu0 0.0
        %1279 = vmatpush.msra.mxu0 0.0
        %1280 = vmatpush.msra.mxu0 0.0
        %1281 = vmatpush.msra.mxu0 0.0
        %1282 = vmatpush.msra.mxu0 0.0
        %1283 = vmatpush.msra.mxu0 0.0
        %1284 = vmatpush.msra.mxu0 0.0
        %v1285 = vand.u32 %v1200, 4294901760
        %v1286 = vsub.f32 %v1200, %v1285
        %1287 = vmatpush.msra.mxu0 %v1286
        %v1288 = vand.u32 %v1198, 4294901760
        %v1289 = vsub.f32 %v1198, %v1288
        %1290 = vmatpush.msra.mxu0 %v1289
        %v1291 = vand.u32 %v1211, 4294901760
        %v1292 = vsub.f32 %v1211, %v1291
        %1293 = vmatmul.f32.gmra.mxu0 %v1292
        %v1294 = vpop.f32.mrf.mxu0
        %v1295 = vadd.f32 %v1269, %v1294
        %1296 = vdwg.mxu0
        %1297 = vmatpush.msra.mxu0 0.0
        %1298 = vmatpush.msra.mxu0 0.0
        %1299 = vmatpush.msra.mxu0 0.0
        %1300 = vmatpush.msra.mxu0 0.0
        %1301 = vmatpush.msra.mxu0 0.0
        %1302 = vmatpush.msra.mxu0 0.0
        %1303 = vmatpush.msra.mxu0 0.0
        %1304 = vmatpush.msra.mxu0 0.0
        %1305 = vmatpush.msra.mxu0 0.0
        %1306 = vmatpush.msra.mxu0 0.0
        %1307 = vmatpush.msra.mxu0 0.0
        %1308 = vmatpush.msra.mxu0 0.0
        %1309 = vmatpush.msra.mxu0 0.0
        %1310 = vmatpush.msra.mxu0 0.0
        %v1311 = vand.u32 %v1200, 4294901760
        %1312 = vmatpush.msra.mxu0 %v1311
        %v1313 = vand.u32 %v1198, 4294901760
        %1314 = vmatpush.msra.mxu0 %v1313
        %v1315 = vand.u32 %v1211, 4294901760
        %v1316 = vsub.f32 %v1211, %v1315
        %v1317 = vand.u32 %v1316, 4294901760
        %1318 = vmatmul.f32.gmra.mxu0 %v1317
        %v1319 = vpop.f32.mrf.mxu0
        %v1320 = vadd.f32 %v1295, %v1319
        %1321 = vdwg.mxu0
        %1322 = vmatpush.msra.mxu0 0.0
        %1323 = vmatpush.msra.mxu0 0.0
        %1324 = vmatpush.msra.mxu0 0.0
        %1325 = vmatpush.msra.mxu0 0.0
        %1326 = vmatpush.msra.mxu0 0.0
        %1327 = vmatpush.msra.mxu0 0.0
        %1328 = vmatpush.msra.mxu0 0.0
        %1329 = vmatpush.msra.mxu0 0.0
        %1330 = vmatpush.msra.mxu0 0.0
        %1331 = vmatpush.msra.mxu0 0.0
        %1332 = vmatpush.msra.mxu0 0.0
        %1333 = vmatpush.msra.mxu0 0.0
        %1334 = vmatpush.msra.mxu0 0.0
        %1335 = vmatpush.msra.mxu0 0.0
        %v1336 = vand.u32 %v1200, 4294901760
        %v1337 = vsub.f32 %v1200, %v1336
        %v1338 = vand.u32 %v1337, 4294901760
        %1339 = vmatpush.msra.mxu0 %v1338
        %v1340 = vand.u32 %v1198, 4294901760
        %v1341 = vsub.f32 %v1198, %v1340
        %v1342 = vand.u32 %v1341, 4294901760
        %1343 = vmatpush.msra.mxu0 %v1342
        %v1344 = vand.u32 %v1211, 4294901760
        %1345 = vmatmul.f32.gmra.mxu0 %v1344
        %v1346 = vpop.f32.mrf.mxu0
        %v1347 = vadd.f32 %v1320, %v1346
        %1348 = vdwg.mxu0
        %1349 = vmatpush.msra.mxu0 0.0
        %1350 = vmatpush.msra.mxu0 0.0
        %1351 = vmatpush.msra.mxu0 0.0
        %1352 = vmatpush.msra.mxu0 0.0
        %1353 = vmatpush.msra.mxu0 0.0
        %1354 = vmatpush.msra.mxu0 0.0
        %1355 = vmatpush.msra.mxu0 0.0
        %1356 = vmatpush.msra.mxu0 0.0
        %1357 = vmatpush.msra.mxu0 0.0
        %1358 = vmatpush.msra.mxu0 0.0
        %1359 = vmatpush.msra.mxu0 0.0
        %1360 = vmatpush.msra.mxu0 0.0
        %1361 = vmatpush.msra.mxu0 0.0
        %1362 = vmatpush.msra.mxu0 0.0
        %v1363 = vand.u32 %v1200, 4294901760
        %1364 = vmatpush.msra.mxu0 %v1363
        %v1365 = vand.u32 %v1198, 4294901760
        %1366 = vmatpush.msra.mxu0 %v1365
        %v1367 = vand.u32 %v1211, 4294901760
        %1368 = vmatmul.f32.gmra.mxu0 %v1367
        %v1369 = vpop.f32.mrf.mxu0
        %v1370 = vadd.f32 %v1347, %v1369
        %1371 = vdwg.mxu0
        %1372 = vmatpush.msra.mxu0 0.0
        %1373 = vmatpush.msra.mxu0 0.0
        %1374 = vmatpush.msra.mxu0 0.0
        %1375 = vmatpush.msra.mxu0 0.0
        %1376 = vmatpush.msra.mxu0 0.0
        %1377 = vmatpush.msra.mxu0 0.0
        %1378 = vmatpush.msra.mxu0 0.0
        %1379 = vmatpush.msra.mxu0 0.0
        %1380 = vmatpush.msra.mxu0 0.0
        %1381 = vmatpush.msra.mxu0 0.0
        %1382 = vmatpush.msra.mxu0 0.0
        %1383 = vmatpush.msra.mxu0 0.0
        %1384 = vmatpush.msra.mxu0 0.0
        %1385 = vmatpush.msra.mxu0 0.0
        %v1386 = vand.u32 %v1201, 4294901760
        %1387 = vmatpush.msra.mxu0 %v1386
        %v1388 = vand.u32 %v1199, 4294901760
        %1389 = vmatpush.msra.mxu0 %v1388
        %v1390 = vand.u32 %v1211, 4294901760
        %v1391 = vsub.f32 %v1211, %v1390
        %v1392 = vand.u32 %v1391, 4294901760
        %v1393 = vsub.f32 %v1391, %v1392
        %v1394 = vand.u32 %v1393, 4294901760
        %1395 = vmatmul.f32.gmra.mxu0 %v1394
        %v1396 = vpop.f32.mrf.mxu0
        %v1397 = vadd.f32 %v1207, %v1396
        %1398 = vdwg.mxu0
        %1399 = vmatpush.msra.mxu0 0.0
        %1400 = vmatpush.msra.mxu0 0.0
        %1401 = vmatpush.msra.mxu0 0.0
        %1402 = vmatpush.msra.mxu0 0.0
        %1403 = vmatpush.msra.mxu0 0.0
        %1404 = vmatpush.msra.mxu0 0.0
        %1405 = vmatpush.msra.mxu0 0.0
        %1406 = vmatpush.msra.mxu0 0.0
        %1407 = vmatpush.msra.mxu0 0.0
        %1408 = vmatpush.msra.mxu0 0.0
        %1409 = vmatpush.msra.mxu0 0.0
        %1410 = vmatpush.msra.mxu0 0.0
        %1411 = vmatpush.msra.mxu0 0.0
        %1412 = vmatpush.msra.mxu0 0.0
        %v1413 = vand.u32 %v1201, 4294901760
        %v1414 = vsub.f32 %v1201, %v1413
        %v1415 = vand.u32 %v1414, 4294901760
        %v1416 = vsub.f32 %v1414, %v1415
        %v1417 = vand.u32 %v1416, 4294901760
        %1418 = vmatpush.msra.mxu0 %v1417
        %v1419 = vand.u32 %v1199, 4294901760
        %v1420 = vsub.f32 %v1199, %v1419
        %v1421 = vand.u32 %v1420, 4294901760
        %v1422 = vsub.f32 %v1420, %v1421
        %v1423 = vand.u32 %v1422, 4294901760
        %1424 = vmatpush.msra.mxu0 %v1423
        %v1425 = vand.u32 %v1211, 4294901760
        %1426 = vmatmul.f32.gmra.mxu0 %v1425
        %v1427 = vpop.f32.mrf.mxu0
        %v1428 = vadd.f32 %v1397, %v1427
        %1429 = vdwg.mxu0
        %1430 = vmatpush.msra.mxu0 0.0
        %1431 = vmatpush.msra.mxu0 0.0
        %1432 = vmatpush.msra.mxu0 0.0
        %1433 = vmatpush.msra.mxu0 0.0
        %1434 = vmatpush.msra.mxu0 0.0
        %1435 = vmatpush.msra.mxu0 0.0
        %1436 = vmatpush.msra.mxu0 0.0
        %1437 = vmatpush.msra.mxu0 0.0
        %1438 = vmatpush.msra.mxu0 0.0
        %1439 = vmatpush.msra.mxu0 0.0
        %1440 = vmatpush.msra.mxu0 0.0
        %1441 = vmatpush.msra.mxu0 0.0
        %1442 = vmatpush.msra.mxu0 0.0
        %1443 = vmatpush.msra.mxu0 0.0
        %v1444 = vand.u32 %v1201, 4294901760
        %v1445 = vsub.f32 %v1201, %v1444
        %1446 = vmatpush.msra.mxu0 %v1445
        %v1447 = vand.u32 %v1199, 4294901760
        %v1448 = vsub.f32 %v1199, %v1447
        %1449 = vmatpush.msra.mxu0 %v1448
        %v1450 = vand.u32 %v1211, 4294901760
        %v1451 = vsub.f32 %v1211, %v1450
        %1452 = vmatmul.f32.gmra.mxu0 %v1451
        %v1453 = vpop.f32.mrf.mxu0
        %v1454 = vadd.f32 %v1428, %v1453
        %1455 = vdwg.mxu0
        %1456 = vmatpush.msra.mxu0 0.0
        %1457 = vmatpush.msra.mxu0 0.0
        %1458 = vmatpush.msra.mxu0 0.0
        %1459 = vmatpush.msra.mxu0 0.0
        %1460 = vmatpush.msra.mxu0 0.0
        %1461 = vmatpush.msra.mxu0 0.0
        %1462 = vmatpush.msra.mxu0 0.0
        %1463 = vmatpush.msra.mxu0 0.0
        %1464 = vmatpush.msra.mxu0 0.0
        %1465 = vmatpush.msra.mxu0 0.0
        %1466 = vmatpush.msra.mxu0 0.0
        %1467 = vmatpush.msra.mxu0 0.0
        %1468 = vmatpush.msra.mxu0 0.0
        %1469 = vmatpush.msra.mxu0 0.0
        %v1470 = vand.u32 %v1201, 4294901760
        %1471 = vmatpush.msra.mxu0 %v1470
        %v1472 = vand.u32 %v1199, 4294901760
        %1473 = vmatpush.msra.mxu0 %v1472
        %v1474 = vand.u32 %v1211, 4294901760
        %v1475 = vsub.f32 %v1211, %v1474
        %v1476 = vand.u32 %v1475, 4294901760
        %1477 = vmatmul.f32.gmra.mxu0 %v1476
        %v1478 = vpop.f32.mrf.mxu0
        %v1479 = vadd.f32 %v1454, %v1478
        %1480 = vdwg.mxu0
        %1481 = vmatpush.msra.mxu0 0.0
        %1482 = vmatpush.msra.mxu0 0.0
        %1483 = vmatpush.msra.mxu0 0.0
        %1484 = vmatpush.msra.mxu0 0.0
        %1485 = vmatpush.msra.mxu0 0.0
        %1486 = vmatpush.msra.mxu0 0.0
        %1487 = vmatpush.msra.mxu0 0.0
        %1488 = vmatpush.msra.mxu0 0.0
        %1489 = vmatpush.msra.mxu0 0.0
        %1490 = vmatpush.msra.mxu0 0.0
        %1491 = vmatpush.msra.mxu0 0.0
        %1492 = vmatpush.msra.mxu0 0.0
        %1493 = vmatpush.msra.mxu0 0.0
        %1494 = vmatpush.msra.mxu0 0.0
        %v1495 = vand.u32 %v1201, 4294901760
        %v1496 = vsub.f32 %v1201, %v1495
        %v1497 = vand.u32 %v1496, 4294901760
        %1498 = vmatpush.msra.mxu0 %v1497
        %v1499 = vand.u32 %v1199, 4294901760
        %v1500 = vsub.f32 %v1199, %v1499
        %v1501 = vand.u32 %v1500, 4294901760
        %1502 = vmatpush.msra.mxu0 %v1501
        %v1503 = vand.u32 %v1211, 4294901760
        %1504 = vmatmul.f32.gmra.mxu0 %v1503
        %v1505 = vpop.f32.mrf.mxu0
        %v1506 = vadd.f32 %v1479, %v1505
        %1507 = vdwg.mxu0
        %1508 = vmatpush.msra.mxu0 0.0
        %1509 = vmatpush.msra.mxu0 0.0
        %1510 = vmatpush.msra.mxu0 0.0
        %1511 = vmatpush.msra.mxu0 0.0
        %1512 = vmatpush.msra.mxu0 0.0
        %1513 = vmatpush.msra.mxu0 0.0
        %1514 = vmatpush.msra.mxu0 0.0
        %1515 = vmatpush.msra.mxu0 0.0
        %1516 = vmatpush.msra.mxu0 0.0
        %1517 = vmatpush.msra.mxu0 0.0
        %1518 = vmatpush.msra.mxu0 0.0
        %1519 = vmatpush.msra.mxu0 0.0
        %1520 = vmatpush.msra.mxu0 0.0
        %1521 = vmatpush.msra.mxu0 0.0
        %v1522 = vand.u32 %v1201, 4294901760
        %1523 = vmatpush.msra.mxu0 %v1522
        %v1524 = vand.u32 %v1199, 4294901760
        %1525 = vmatpush.msra.mxu0 %v1524
        %v1526 = vand.u32 %v1211, 4294901760
        %1527 = vmatmul.f32.gmra.mxu0 %v1526
        %v1528 = vpop.f32.mrf.mxu0
        %v1529 = vadd.f32 %v1506, %v1528
        %1530 = vdwg.mxu0
        %v1531 = vmax.f32 %v1370, 0.0
        %v1532 = vmax.f32 %v1529, 0.0
        %v1533 = vld [vmem:[%s5] sm:$0xff]
        %1535 = vset.pattern.permute.xlu0 0
        %1536 = vperm.xlu0 %1535, %v1533
        %v1537 = vpop.permute.xlu0 %1536
        %v1539 = vmul.f32 %v1531, %v1537
        %v1540 = vmul.f32 %v1532, %v1537
        %v1541 = vrot.slane %v1539, 4
        %v1542 = vadd.f32 %v1539, %v1541
        %v1543 = vrot.slane %v1542, 2
        %v1544 = vadd.f32 %v1542, %v1543
        %v1545 = vrot.slane %v1544, 1
        %v1546 = vadd.f32 %v1544, %v1545
        %v1547 = vrot.slane %v1540, 4
        %v1548 = vadd.f32 %v1540, %v1547
        %v1549 = vrot.slane %v1548, 2
        %v1550 = vadd.f32 %v1548, %v1549
        %v1551 = vrot.slane %v1550, 1
        %v1552 = vadd.f32 %v1550, %v1551
        %v1553 = vld [vmem:[#allocation2] sm:$0x1]
        %1555 = vset.pattern.permute.xlu0 0
        %1556 = vperm.xlu0 %1555, %v1553
        %v1557 = vpop.permute.xlu0 %1556
        %v1559 = vperm.slane %v1557, 0
        %v1560 = vadd.f32 %v1546, %v1559
        %v1561 = vadd.f32 %v1552, %v1559
        %v1564 = vrot.slane %v1561, 7
        %vm1565 = vcmask 1040384
        %v1566 = vsel %vm1565, %v1560, %v1564
        %v1568 = vlaneseq
        %vm1569 = vcmp.ge.s32.totalorder %v1568, 0
        %vm1570 = vcmp.lt.s32.totalorder %v1568, 256
        %vm1571 = vmand %vm1569, %vm1570
        %1572 = vst.msk [vmem:[%s286] sm:$0x3] %vm1571, %v1566
        %s1573 = sand.u32 %s183, 1
        %s1574 = scalar_lea.sflag [#allocation4], %s1573
        %s1575 = sand.u32 %s183, 1
        %s1576 = smul.addr %s1575, 2
        %s1577 = scalar_lea.vmem [#allocation3], %s1576
        // Predicated region
        $region49: #{model3_forward.1} parent=47 // pred_check
          %p1578 = pneg %p193
        $region50: #{model3_forward.1} parent=47 // pred_check_branch
          %1580 = sbr.rel (%p1578) target = $region52
        $region51: #{model3_forward.1} parent=47 // pred_region
          %s1581 = smul.u32 2, %s23
          %s1582 = ssub.s32 3, %s1581
          %p1583 = scmp.lt.s32.totalorder %s1582, 2
          %s1584 = scalar_select %p1583, %s1582, 2
          %s1585 = ssub.s32 2, %s1584
          %s1586 = sshll.u32 %s1585, 4
          %1587 = vsyncadd %s1574, %s1586
          %p1588 = scmp.ne.s32.totalorder 0, %s1584
          %s1589 = scalar_lea.hbm %s7, %s1581
          %s1590 = sshll.u32 %s1584, 4
          %s1591 = sshll.u32 %s1577, 4
          %s1592 = int_to_ptr.vmem [resolvable:$true] %s1591
          %s1593 = sshll.u32 %s1589, 4
          %s1594 = int_to_ptr.hbm [resolvable:$true] %s1593
          %1596 = dma.vmem_to_hbm [thread:$0]  (%p1588), %s1592, %s1590, %s1594, %s1574
        $region52: #{model3_forward.1} parent=47 // pred_fallthru
          _
      $region48: #{model3_forward.1} parent=5 // pred_fallthru
        _
      %p1597 = scmp.le.s32.totalorder 2, %s18
      // Predicated region
      $region53: #{model3_forward.1} parent=5 // pred_check
        %p1598 = pneg %p1597
      $region54: #{model3_forward.1} parent=5 // pred_check_branch
        %1600 = sbr.rel (%p1598) target = $region56
      $region55: #{model3_forward.1} parent=5 // pred_region
        %s1601 = ssub.s32 %s18, 2
        // Predicated region
        $region57: #{model3_forward.1} parent=55 // pred_check
          %p1602 = pneg %p199
        $region58: #{model3_forward.1} parent=55 // pred_check_branch
          %1604 = sbr.rel (%p1602) target = $region60
        $region59: #{model3_forward.1} parent=55 // pred_region
          %s1605 = sand.u32 %s184, 1
          %s1606 = scalar_lea.sflag [#allocation4], %s1605
          %s1607 = sand.u32 %s184, 1
          %s1608 = smul.addr %s1607, 2
          %s1609 = scalar_lea.vmem [#allocation3], %s1608
          %1611 = dma.done %s1606, 32
        $region60: #{model3_forward.1} parent=55 // pred_fallthru
          _
      $region56: #{model3_forward.1} parent=5 // pred_fallthru
        _
    $region6: #{model3_forward.1} parent=1 // loop_footer
      %s22 = sadd.s32 1, %s18
    $region7: #{model3_forward.1} parent=1 // loop_footer_branch
      %17 = sbr.rel target = $region3
    $region8: #{model3_forward.1} parent=1 // loop_exit
      _
    %1612 = vsyncpa [#allocation4], 1
    %s1613 = scalar_lea.sflag [#allocation4], 1
    %1614 = vsyncpa %s1613, 1

</llo_original>
